<compile_context>
chip_gen: v6e
topology: v6e:2x2x1
jax: 0.10.0
libtpu: 0.0.40
codegen_flags: <defaults>
</compile_context>

<pallas_src>
import functools
import warnings

import jax
import jax.numpy as jnp
from jax.experimental import pallas as pl
from jax.experimental.pallas import tpu as pltpu

EPS = 1e-5
LANE = 128
SUBLANE = 8


def _round_up(x, m):
    return (x + m - 1) // m * m


# -----------------------------------------------------------------------------
# Small capability probes (each runs a tiny pallas_call once and is cached).
# -----------------------------------------------------------------------------
@functools.lru_cache(maxsize=None)
def _roll_sign():
    """Calibrate pltpu.roll's sublane-rotate direction; None -> jnp.roll fallback."""
    def probe(o_ref):
        o_ref[...] = pltpu.roll(
            jax.lax.broadcasted_iota(jnp.int32, (64, 128), 0), 1, 0)

    try:
        r = pl.pallas_call(
            probe, out_shape=jax.ShapeDtypeStruct((64, 128), jnp.int32))()
        v = int(jax.device_get(r)[1, 0])
    except Exception:
        warnings.warn("pltpu.roll probe failed; using jnp.roll fallback "
                      "(correct but slower).")
        return None
    if v == 0:       # numpy convention: roll(x, s)[p] == x[p - s]
        return -1
    if v == 2:       # opposite convention: roll(x, s)[p] == x[p + s]
        return 1
    warnings.warn("pltpu.roll semantics unrecognized; using jnp.roll fallback.")
    return None


@functools.lru_cache(maxsize=None)
def _buffered1_ok():
    """Can constant operands be single-buffered with pipeline_mode=pl.Buffered(1)?"""
    def probe(w_ref, o_ref):
        o_ref[...] = w_ref[...] * 2.0

    try:
        spec = pl.BlockSpec((8, 128), lambda i: (0, 0),
                            pipeline_mode=pl.Buffered(1))
        r = pl.pallas_call(
            probe, grid=(2,),
            in_specs=[spec],
            out_specs=pl.BlockSpec((8, 128), lambda i: (i, 0)),
            out_shape=jax.ShapeDtypeStruct((16, 128), jnp.float32),
        )(jnp.ones((8, 128), jnp.float32))
        return bool(jax.device_get(jnp.all(r == 2.0)))
    except Exception:
        return False


@functools.lru_cache(maxsize=None)
def _grouped_k_ok(cin):
    """Can Mosaic concat cin-lane pieces on the minor axis and feed the MXU (im2col)?"""
    def probe(a_ref, w_ref, o_ref):
        a = a_ref[...]
        x3 = jnp.concatenate([a, a, a], axis=1)
        lhs = jnp.concatenate([x3[0:8], x3[8:16], x3[16:24]], axis=1)
        o_ref[...] = jnp.dot(lhs, w_ref[...], preferred_element_type=jnp.float32)

    try:
        r = pl.pallas_call(
            probe, out_shape=jax.ShapeDtypeStruct((8, 128), jnp.float32),
        )(jnp.ones((24, cin), jnp.float32), jnp.ones((9 * cin, 128), jnp.float32))
        return bool(jax.device_get(jnp.all(r == 9.0 * cin)))
    except Exception:
        return False


def _weight_spec(block_shape, index_map):
    """BlockSpec for the grid-invariant weight block; single-buffered if supported."""
    if _buffered1_ok():
        return pl.BlockSpec(block_shape, index_map, pipeline_mode=pl.Buffered(1))
    return pl.BlockSpec(block_shape, index_map)


@functools.lru_cache(maxsize=None)
def _vmem_limit_bytes():
    cap = 0
    try:
        cap = int(pltpu.get_tpu_info().vmem_capacity_bytes)
    except Exception:
        cap = 0
    if cap <= 0:
        cap = 64 * 1024 * 1024          # conservative (v7x-sized) fallback
    # ~7/8 of physical, capped at 100 MiB (v5e/v6e); ~56 MiB on v7x.
    return min(cap - cap // 8, 100 * 1024 * 1024)


def _compiler_params():
    return pltpu.CompilerParams(
        dimension_semantics=("parallel", "parallel"),
        vmem_limit_bytes=_vmem_limit_bytes(),
    )


# -----------------------------------------------------------------------------
# Conv kernel: 3x3 conv (+ optional fused input BN+ReLU) + per-tile BN partial sums.
# -----------------------------------------------------------------------------
def _make_conv_kernel(t, wp, width, cin, cout, coutp, n_row_tiles,
                      apply_bn_relu, compute_dtype, grouped_k, roll_sign):
    rows = t * wp   # flattened (row, padded-col) pixel axis of the output tile

    def shift(xf, d):
        # y[p] == xf[(p + d) % P]; the wrap only moves zeros because columns 0 and
        # >= width+1 are zeroed in prep().
        if d == 0:
            return xf
        n = xf.shape[0]
        if roll_sign is None:
            return jnp.roll(xf, -d, axis=0)            # correctness fallback
        return pltpu.roll(xf, (roll_sign * d) % n, 0)

    def kernel(xp_ref, xb_ref, xn_ref, w_ref, b_ref, sc_ref, sh_ref,
               y_ref, st_ref):
        i = pl.program_id(1)   # row-tile index

        if apply_bn_relu:
            sc = sc_ref[...].reshape(1, 1, cin)
            sh = sh_ref[...].reshape(1, 1, cin)

        # column validity (col 0 and cols >= width+1 are the conv zero padding)
        col = jax.lax.broadcasted_iota(jnp.int32, (1, wp, 1), 1)
        col_ok = (col >= 1) & (col <= width)

        def prep(piece, row_valid):
            # optional fused "BN(previous conv) + ReLU", then zero out conv padding
            p = piece.astype(jnp.float32)
            if apply_bn_relu:
                p = jnp.maximum(p * sc + sh, 0.0)
            p = jnp.where(col_ok & row_valid, p, 0.0)
            return p.reshape(-1, cin)

        # (t+2)*wp x cin tile: 1 halo row above, t body rows, 1 halo row below
        xf = jnp.concatenate(
            [prep(xp_ref[0], i > 0),
             prep(xb_ref[0], True),
             prep(xn_ref[0], i < n_row_tiles - 1)], axis=0)

        # three dx taps via two XLU rolls of the whole tile (no unaligned slices)
        taps = {d: shift(xf, d) for d in (-1, 0, 1)}

        if grouped_k:
            # im2col along K: one (rows, 9*cin) @ (9*cin, coutp) MXU matmul
            xcat = jnp.concatenate([taps[-1], taps[0], taps[1]], axis=1)
            lhs = jnp.concatenate(
                [xcat[dy * wp:dy * wp + rows] for dy in range(3)],
                axis=1).astype(compute_dtype)
            y = jnp.dot(lhs, w_ref[...].reshape(9 * cin, coutp),
                        preferred_element_type=jnp.float32)
        else:
            # fallback: 9 accumulating K=cin dots (always lowers, slower)
            ctaps = {d: taps[d].astype(compute_dtype) for d in (-1, 0, 1)}
            y = jnp.zeros((rows, coutp), jnp.float32)
            for dy in range(3):
                for dx in range(3):
                    y = y + jnp.dot(ctaps[dx - 1][dy * wp:dy * wp + rows],
                                    w_ref[dy * 3 + dx],
                                    preferred_element_type=jnp.float32)
        y = y + b_ref[...]

        # per-tile, per-channel BatchNorm partial sums over the valid columns,
        # computed from the f32 accumulator (before any bf16 storage rounding)
        y3 = y.reshape(t, wp, coutp)
        ym = jnp.where(col_ok, y3, 0.0)
        s = jnp.sum(ym, axis=(0, 1), keepdims=True).reshape(1, coutp)
        q = jnp.sum(ym * y3, axis=(0, 1), keepdims=True).reshape(1, coutp)
        st_ref[0, 0] = jnp.concatenate([s, q], axis=0)[:, :cout]

        # store the pre-BN conv output; only the real cout channels go to HBM
        y_ref[0] = y3[:, :, :cout].astype(y_ref.dtype)

    return kernel


def conv3x3_bn_stats(x, w9, bias, in_scale, in_shift, *, width, cout, tile_h,
                     apply_bn_relu, compute_dtype, store_dtype):
    """3x3 conv over column-padded NHWC, plus per-tile BN partial statistics.

    x        : (N, H, Wp, Cin); col 0 / cols >= width+1 are the conv zero padding
               (masked in-kernel, so they may hold garbage when apply_bn_relu=True).
    w9       : (9, Cin, CoutPad) taps, bias: (1, CoutPad) f32.
    in_scale / in_shift: (1, Cin) f32; when apply_bn_relu the kernel convolves
               relu(x * in_scale + in_shift) (fused BN+ReLU of the previous conv).
    Returns (y, stats): y (N, H, Wp, Cout) store_dtype pre-BN conv output,
               stats (N, H//tile_h, 2, Cout) f32 per-tile [sum, sum_sq].
    """
    n, h, wp, cin = x.shape
    coutp = w9.shape[-1]
    t = tile_h
    assert h % t == 0, (h, t)
    n_row_tiles = h // t

    kernel = _make_conv_kernel(t, wp, width, cin, cout, coutp, n_row_tiles,
                               apply_bn_relu, compute_dtype,
                               _grouped_k_ok(cin), _roll_sign())

    return pl.pallas_call(
        kernel,
        grid=(n, n_row_tiles),
        in_specs=[
            # 1-row halo above (clamped at the image top, masked in-kernel)
            pl.BlockSpec((1, 1, wp, cin),
                         lambda b, i: (b, jnp.maximum(i * t - 1, 0), 0, 0)),
            # body rows
            pl.BlockSpec((1, t, wp, cin), lambda b, i: (b, i, 0, 0)),
            # 1-row halo below (clamped at the image bottom, masked in-kernel)
            pl.BlockSpec((1, 1, wp, cin),
                         lambda b, i: (b, jnp.minimum((i + 1) * t, h - 1), 0, 0)),
            _weight_spec((9, cin, coutp), lambda b, i: (0, 0, 0)),
            pl.BlockSpec((1, coutp), lambda b, i: (0, 0)),
            pl.BlockSpec((1, cin), lambda b, i: (0, 0)),
            pl.BlockSpec((1, cin), lambda b, i: (0, 0)),
        ],
        out_specs=(
            pl.BlockSpec((1, t, wp, cout), lambda b, i: (b, i, 0, 0)),
            pl.BlockSpec((1, 1, 2, cout), lambda b, i: (b, i, 0, 0)),
        ),
        out_shape=(
            jax.ShapeDtypeStruct((n, h, wp, cout), store_dtype),
            jax.ShapeDtypeStruct((n, n_row_tiles, 2, cout), jnp.float32),
        ),
        compiler_params=_compiler_params(),
    )(x, x, x, w9, bias, in_scale, in_shift)


# -----------------------------------------------------------------------------
# Final BN + ReLU (elementwise, bf16 in / bf16 out, tiled the same way).
# -----------------------------------------------------------------------------
def _norm_relu_kernel(y_ref, sc_ref, sh_ref, o_ref):
    sc = sc_ref[...].reshape(1, 1, 1, -1)
    sh = sh_ref[...].reshape(1, 1, 1, -1)
    o_ref[...] = jnp.maximum(
        y_ref[...].astype(jnp.float32) * sc + sh, 0.0).astype(o_ref.dtype)


def bn_relu(y, scale, shift, *, tile_h):
    n, h, wp, c = y.shape
    t = tile_h
    return pl.pallas_call(
        _norm_relu_kernel,
        grid=(n, h // t),
        in_specs=[
            pl.BlockSpec((1, t, wp, c), lambda b, i: (b, i, 0, 0)),
            pl.BlockSpec((1, c), lambda b, i: (0, 0)),
            pl.BlockSpec((1, c), lambda b, i: (0, 0)),
        ],
        out_specs=pl.BlockSpec((1, t, wp, c), lambda b, i: (b, i, 0, 0)),
        out_shape=jax.ShapeDtypeStruct((n, h, wp, c), y.dtype),
        compiler_params=_compiler_params(),
    )(y, scale, shift)


# -----------------------------------------------------------------------------
# Host-side glue (tiny per-channel math + layout prep).
# -----------------------------------------------------------------------------
def _bn_scale_shift(stats, gamma, beta, count):
    # exact batch statistics from the per-tile partial sums
    s = jnp.sum(stats[:, :, 0, :], axis=(0, 1))
    q = jnp.sum(stats[:, :, 1, :], axis=(0, 1))
    mean = s / count
    var = jnp.maximum(q / count - mean * mean, 0.0)
    scale = gamma.astype(jnp.float32) * jax.lax.rsqrt(var + EPS)
    shift = beta.astype(jnp.float32) - mean * scale
    return scale.reshape(1, -1), shift.reshape(1, -1)


def _prep_conv_weight(w_oihw, coutp, dtype):
    # PyTorch (Cout, Cin, 3, 3) -> (9, Cin, CoutPad), zero-padded output channels.
    # Flattening (kh, kw, cin) gives K index kh*3*cin + kw*cin + c, matching the
    # in-kernel im2col lhs layout.
    cout, cin = w_oihw.shape[0], w_oihw.shape[1]
    w = jnp.transpose(w_oihw, (2, 3, 1, 0)).reshape(9, cin, cout)
    return jnp.pad(w, ((0, 0), (0, 0), (0, coutp - cout))).astype(dtype)


def _default_tile_h(n, h, wp, cin, cout, coutp, store_bytes, compute_bytes):
    # per-output-row VMEM bytes: double-buffered I/O tiles + in-kernel temporaries
    per_row = wp * (2 * cin * store_bytes + 2 * cout * store_bytes
                    + 20 * cin * 4 + 9 * cin * compute_bytes + 2 * coutp * 4)
    budget = 12 * 1024 * 1024       # leaves room for weights even in v7x's 64 MiB
    t_max = max(1, budget // max(per_row, 1))
    divisors = sorted((d for d in range(1, h + 1) if h % d == 0), reverse=True)
    min_tiles = min(4, n * h)       # keep both v7x TensorCores fed
    for d in divisors:
        if d <= t_max and n * (h // d) >= min_tiles:
            return d
    for d in divisors:
        if d <= t_max:
            return d
    return 1


def double_conv_nhwc(x, params, *, width, tile_h=None, compute_dtype=jnp.bfloat16):
    """DoubleConv on the padded-NHWC activation layout.

    x: (N, H, Wp, Cin); column 0 and columns >= width+1 are the conv zero-pad
    columns (ignored / re-zeroed in-kernel).  Returns (N, H, Wp, Cout) in the same
    layout and dtype, so successive UNet blocks can chain without NCHW<->NHWC or
    pad/slice round trips through HBM.
    """
    n, h, wp, cin = x.shape
    cout = int(params["b1"].shape[0])
    coutp = _round_up(cout, LANE)
    store_dtype = x.dtype
    bpe = jnp.dtype(store_dtype).itemsize
    cpe = jnp.dtype(compute_dtype).itemsize
    if tile_h is None:
        tile_h = _default_tile_h(n, h, wp, max(cin, cout), cout, coutp, bpe, cpe)
    count = float(n * h * width)

    w1 = _prep_conv_weight(params["w1"], coutp, compute_dtype)
    w2 = _prep_conv_weight(params["w2"], coutp, compute_dtype)
    b1 = jnp.pad(params["b1"].astype(jnp.float32), (0, coutp - cout)).reshape(1, coutp)
    b2 = jnp.pad(params["b2"].astype(jnp.float32), (0, coutp - cout)).reshape(1, coutp)

    one = jnp.ones((1, cin), jnp.float32)
    zero = jnp.zeros((1, cin), jnp.float32)

    # conv1 + BN1 partial statistics
    y1, st1 = conv3x3_bn_stats(x, w1, b1, one, zero, width=width, cout=cout,
                               tile_h=tile_h, apply_bn_relu=False,
                               compute_dtype=compute_dtype, store_dtype=store_dtype)
    sc1, sh1 = _bn_scale_shift(st1, params["g1"], params["be1"], count)

    # conv2 with BN1+ReLU fused onto its input (post-BN activation never hits HBM)
    y2, st2 = conv3x3_bn_stats(y1, w2, b2, sc1, sh1, width=width, cout=cout,
                               tile_h=tile_h, apply_bn_relu=True,
                               compute_dtype=compute_dtype, store_dtype=store_dtype)
    sc2, sh2 = _bn_scale_shift(st2, params["g2"], params["be2"], count)

    # final BN2 + ReLU (a downstream consumer could fuse this the same way conv2
    # fuses BN1+ReLU; kept as a lean bf16 elementwise pass at the module boundary)
    return bn_relu(y2, sc2, sh2, tile_h=tile_h)


def double_conv(x_nchw, params, *, tile_h=None, compute_dtype=jnp.bfloat16):
    """PyTorch-semantics DoubleConv: (Conv3x3(pad=1) -> BatchNorm2d -> ReLU) x 2,
    NCHW float32 in/out.  The NCHW <-> padded-NHWC conversion is module-boundary
    glue; chained UNet blocks should call double_conv_nhwc directly."""
    n, cin, h, w = x_nchw.shape
    wp = _round_up(w + 2, SUBLANE)
    x = jnp.transpose(x_nchw, (0, 2, 3, 1))
    x = jnp.pad(x, ((0, 0), (0, 0), (1, wp - w - 1), (0, 0))).astype(compute_dtype)
    out = double_conv_nhwc(x, params, width=w, tile_h=tile_h,
                           compute_dtype=compute_dtype)
    return jnp.transpose(out[:, :, 1:w + 1, :], (0, 3, 1, 2)).astype(jnp.float32)


# ---------------- pure-JAX reference (correctness check only) ----------------
def _ref_double_conv(x, p):
    def block(x, wt, b, g, be):
        y = jax.lax.conv_general_dilated(
            x, jnp.transpose(wt, (2, 3, 1, 0)), (1, 1), "SAME",
            dimension_numbers=("NCHW", "HWIO", "NCHW"),
            precision=jax.lax.Precision.HIGHEST)
        y = y + b.reshape(1, -1, 1, 1)
        m = jnp.mean(y, axis=(0, 2, 3), keepdims=True)
        v = jnp.mean(jnp.square(y - m), axis=(0, 2, 3), keepdims=True)
        y = (y - m) * jax.lax.rsqrt(v + EPS) * g.reshape(1, -1, 1, 1) \
            + be.reshape(1, -1, 1, 1)
        return jnp.maximum(y, 0.0)

    y = block(x, p["w1"], p["b1"], p["g1"], p["be1"])
    return block(y, p["w2"], p["b2"], p["g2"], p["be2"])


if __name__ == "__main__":
    N, CIN, COUT, H, W = 2, 2, 16, 16, 16   # mirrors UNet.inc1 = DoubleConv(2, 16)
    key = jax.random.PRNGKey(0)
    ks = jax.random.split(key, 9)
    x = jax.random.normal(ks[0], (N, CIN, H, W), jnp.float32)
    params = dict(
        w1=0.1 * jax.random.normal(ks[1], (COUT, CIN, 3, 3), jnp.float32),
        b1=0.1 * jax.random.normal(ks[2], (COUT,), jnp.float32),
        g1=1.0 + 0.1 * jax.random.normal(ks[3], (COUT,), jnp.float32),
        be1=0.1 * jax.random.normal(ks[4], (COUT,), jnp.float32),
        w2=0.1 * jax.random.normal(ks[5], (COUT, COUT, 3, 3), jnp.float32),
        b2=0.1 * jax.random.normal(ks[6], (COUT,), jnp.float32),
        g2=1.0 + 0.1 * jax.random.normal(ks[7], (COUT,), jnp.float32),
        be2=0.1 * jax.random.normal(ks[8], (COUT,), jnp.float32),
    )

    ref = jax.block_until_ready(_ref_double_conv(x, params))

    # f32 compute + f32 storage, 4-row tiles: tight check of the halo specs, the
    # im2col matmul and the cross-tile BN reduction.
    out_f32 = jax.block_until_ready(
        double_conv(x, params, tile_h=4, compute_dtype=jnp.float32))
    assert out_f32.shape == (N, COUT, H, W)
    err_f32 = float(jnp.max(jnp.abs(out_f32 - ref)))
    assert err_f32 < 2e-3, f"f32 path max err {err_f32}"

    # bf16 MXU path with bf16 HBM intermediates (production default on all gens)
    out_bf16 = jax.block_until_ready(double_conv(x, params))
    err_bf16 = float(jnp.max(jnp.abs(out_bf16 - ref)))
    assert err_bf16 < 1e-1, f"bf16 path max err {err_bf16}"

    print("KERNEL_OK")
</pallas_src>

<mosaic_0001>
module attributes {stable_mosaic.version = 11 : i64} {
  func.func @probe(%arg0: memref<24x2xf32, #tpu.memory_space<vmem>>, %arg1: memref<18x128xf32, #tpu.memory_space<vmem>>, %arg2: memref<8x128xf32, #tpu.memory_space<vmem>>) attributes {dimension_semantics = [], scalar_prefetch = 0 : i64, scratch_operands = 0 : i64, tpu.core_type = #tpu.core_type<tc>} {
    %c0 = arith.constant 0 : index
    %c0_0 = arith.constant 0 : index
    %0 = vector.load %arg0[%c0, %c0_0] : memref<24x2xf32, #tpu.memory_space<vmem>>, vector<24x2xf32>
    %1 = tpu.concatenate %0, %0, %0 in 1 : vector<24x2xf32>, vector<24x2xf32>, vector<24x2xf32> -> vector<24x6xf32>
    %2 = vector.extract_strided_slice %1 {offsets = [0, 0], sizes = [8, 6], strides = [1, 1]} : vector<24x6xf32> to vector<8x6xf32>
    %3 = vector.extract_strided_slice %1 {offsets = [8, 0], sizes = [8, 6], strides = [1, 1]} : vector<24x6xf32> to vector<8x6xf32>
    %4 = vector.extract_strided_slice %1 {offsets = [16, 0], sizes = [8, 6], strides = [1, 1]} : vector<24x6xf32> to vector<8x6xf32>
    %5 = tpu.concatenate %2, %3, %4 in 1 : vector<8x6xf32>, vector<8x6xf32>, vector<8x6xf32> -> vector<8x18xf32>
    %c0_1 = arith.constant 0 : index
    %c0_2 = arith.constant 0 : index
    %6 = vector.load %arg1[%c0_1, %c0_2] : memref<18x128xf32, #tpu.memory_space<vmem>>, vector<18x128xf32>
    %cst = arith.constant dense<0.000000e+00> : vector<8x128xf32>
    %7 = tpu.matmul %5, %6, %cst {dimension_numbers = #tpu.dot_dimension_numbers<[1], [0], [0], [1], [0, 0, 1, 1], [], []>} : vector<8x18xf32>, vector<18x128xf32>, vector<8x128xf32> -> vector<8x128xf32>
    %c0_3 = arith.constant 0 : index
    %c0_4 = arith.constant 0 : index
    %8 = vector.load %arg2[%c0_3, %c0_4] : memref<8x128xf32, #tpu.memory_space<vmem>>, vector<8x128xf32>
    tpu.vector_store %arg2[%c0_3, %c0_4], %7 {strides = array<i32>} : memref<8x128xf32, #tpu.memory_space<vmem>>, vector<8x128xf32>,
    return
  }
}

module attributes {stable_mosaic.version = 11 : i64} {
  func.func @probe(%arg0: i32, %arg1: memref<8x128xf32, #tpu.memory_space<vmem>>, %arg2: memref<8x128xf32, #tpu.memory_space<vmem>>) attributes {dimension_semantics = [#tpu.dimension_semantics<arbitrary>], iteration_bounds = array<i64: 2>, scalar_prefetch = 0 : i64, scratch_operands = 0 : i64, tpu.core_type = #tpu.core_type<tc>, window_params = [{pipeline_mode = #tpu.pipeline_mode<synchronous>, transform_indices = @transform_0, window_bounds = array<i64: 8, 128>}, {transform_indices = @transform_1, window_bounds = array<i64: 8, 128>}]} {
    %c0 = arith.constant 0 : index
    %c0_0 = arith.constant 0 : index
    %0 = vector.load %arg1[%c0, %c0_0] : memref<8x128xf32, #tpu.memory_space<vmem>>, vector<8x128xf32>
    %cst = arith.constant 2.000000e+00 : f32
    %1 = vector.broadcast %cst : f32 to vector<8x128xf32>
    %2 = arith.mulf %0, %1 : vector<8x128xf32>
    %c0_1 = arith.constant 0 : index
    %c0_2 = arith.constant 0 : index
    %3 = vector.load %arg2[%c0_1, %c0_2] : memref<8x128xf32, #tpu.memory_space<vmem>>, vector<8x128xf32>
    tpu.vector_store %arg2[%c0_1, %c0_2], %2 {strides = array<i32>} : memref<8x128xf32, #tpu.memory_space<vmem>>, vector<8x128xf32>,
    return
  }
  func.func @transform_0(%arg0: i32) -> (i32, i32) {
    %c0_i32 = arith.constant 0 : i32
    %c0_i32_0 = arith.constant 0 : i32
    %c0_i32_1 = arith.constant 0 : i32
    return %c0_i32, %c0_i32_0 : i32, i32
  }
  func.func @transform_1(%arg0: i32) -> (i32, i32) {
    %c0_i32 = arith.constant 0 : i32
    %c0_i32_0 = arith.constant 0 : i32
    return %arg0, %c0_i32 : i32, i32
  }
}

module attributes {stable_mosaic.version = 11 : i64} {
  func.func @kernel(%arg0: i32, %arg1: i32, %arg2: memref<1x1x24x2xf32, #tpu.memory_space<vmem>>, %arg3: memref<1x4x24x2xf32, #tpu.memory_space<vmem>>, %arg4: memref<1x1x24x2xf32, #tpu.memory_space<vmem>>, %arg5: memref<9x2x128xf32, #tpu.memory_space<vmem>>, %arg6: memref<1x128xf32, #tpu.memory_space<vmem>>, %arg7: memref<1x2xf32, #tpu.memory_space<vmem>>, %arg8: memref<1x2xf32, #tpu.memory_space<vmem>>, %arg9: memref<1x4x24x16xf32, #tpu.memory_space<vmem>>, %arg10: memref<1x1x2x16xf32, #tpu.memory_space<vmem>>) attributes {dimension_semantics = [#tpu.dimension_semantics<parallel>, #tpu.dimension_semantics<parallel>], iteration_bounds = array<i64: 2, 4>, scalar_prefetch = 0 : i64, scratch_operands = 0 : i64, tpu.core_type = #tpu.core_type<tc>, window_params = [{transform_indices = @transform_0, window_bounds = array<i64: 1, 1, 24, 2>}, {transform_indices = @transform_1, window_bounds = array<i64: 1, 4, 24, 2>}, {transform_indices = @transform_2, window_bounds = array<i64: 1, 1, 24, 2>}, {pipeline_mode = #tpu.pipeline_mode<synchronous>, transform_indices = @transform_3, window_bounds = array<i64: 9, 2, 128>}, {pipeline_mode = #tpu.pipeline_mode<synchronous>, transform_indices = @transform_4, window_bounds = array<i64: 1, 128>}, {pipeline_mode = #tpu.pipeline_mode<synchronous>, transform_indices = @transform_5, window_bounds = array<i64: 1, 2>}, {pipeline_mode = #tpu.pipeline_mode<synchronous>, transform_indices = @transform_6, window_bounds = array<i64: 1, 2>}, {transform_indices = @transform_7, window_bounds = array<i64: 1, 4, 24, 16>}, {transform_indices = @transform_8, window_bounds = array<i64: 1, 1, 2, 16>}]} {
    %0 = tpu.iota {dimensions = array<i32: 1>} : vector<1x24x1xi32>
    %c1_i32 = arith.constant 1 : i32
    %1 = vector.broadcast %c1_i32 : i32 to vector<1x24x1xi32>
    %2 = arith.cmpi sge, %0, %1 : vector<1x24x1xi32>
    %c16_i32 = arith.constant 16 : i32
    %3 = vector.broadcast %c16_i32 : i32 to vector<1x24x1xi32>
    %4 = arith.cmpi sle, %0, %3 : vector<1x24x1xi32>
    %5 = arith.andi %2, %4 : vector<1x24x1xi1>
    %c0 = arith.constant 0 : index
    %c0_0 = arith.constant 0 : index
    %c0_1 = arith.constant 0 : index
    %c0_2 = arith.constant 0 : index
    %6 = vector.load %arg2[%c0, %c0_0, %c0_1, %c0_2] : memref<1x1x24x2xf32, #tpu.memory_space<vmem>>, vector<1x1x24x2xf32>
    %7 = vector.shape_cast %6 : vector<1x1x24x2xf32> to vector<1x24x2xf32>
    %c0_i32 = arith.constant 0 : i32
    %8 = arith.cmpi sgt, %arg1, %c0_i32 : i32
    %9 = vector.broadcast %8 : i1 to vector<1x24x1xi1>
    %10 = arith.andi %5, %9 : vector<1x24x1xi1>
    %cst = arith.constant 0.000000e+00 : f32
    %11 = vector.shape_cast %10 : vector<1x24x1xi1> to vector<1x24x1xi1>
    %12 = vector.broadcast %11 : vector<1x24x1xi1> to vector<1x24x2xi1>
    %13 = vector.broadcast %cst : f32 to vector<1x24x2xf32>
    %14 = arith.select %12, %7, %13 : vector<1x24x2xi1>, vector<1x24x2xf32>
    %15 = vector.shape_cast %14 : vector<1x24x2xf32> to vector<24x2xf32>
    %c0_3 = arith.constant 0 : index
    %c0_4 = arith.constant 0 : index
    %c0_5 = arith.constant 0 : index
    %c0_6 = arith.constant 0 : index
    %16 = vector.load %arg3[%c0_3, %c0_4, %c0_5, %c0_6] : memref<1x4x24x2xf32, #tpu.memory_space<vmem>>, vector<1x4x24x2xf32>
    %17 = vector.shape_cast %16 : vector<1x4x24x2xf32> to vector<4x24x2xf32>
    %true = arith.constant true
    %18 = vector.broadcast %true : i1 to vector<1x24x1xi1>
    %19 = arith.andi %5, %18 : vector<1x24x1xi1>
    %cst_7 = arith.constant 0.000000e+00 : f32
    %20 = vector.shape_cast %19 : vector<1x24x1xi1> to vector<1x24x1xi1>
    %21 = vector.broadcast %20 : vector<1x24x1xi1> to vector<4x24x2xi1>
    %22 = vector.broadcast %cst_7 : f32 to vector<4x24x2xf32>
    %23 = arith.select %21, %17, %22 : vector<4x24x2xi1>, vector<4x24x2xf32>
    %24 = vector.shape_cast %23 : vector<4x24x2xf32> to vector<96x2xf32>
    %c0_8 = arith.constant 0 : index
    %c0_9 = arith.constant 0 : index
    %c0_10 = arith.constant 0 : index
    %c0_11 = arith.constant 0 : index
    %25 = vector.load %arg4[%c0_8, %c0_9, %c0_10, %c0_11] : memref<1x1x24x2xf32, #tpu.memory_space<vmem>>, vector<1x1x24x2xf32>
    %26 = vector.shape_cast %25 : vector<1x1x24x2xf32> to vector<1x24x2xf32>
    %c3_i32 = arith.constant 3 : i32
    %27 = arith.cmpi slt, %arg1, %c3_i32 : i32
    %28 = vector.broadcast %27 : i1 to vector<1x24x1xi1>
    %29 = arith.andi %5, %28 : vector<1x24x1xi1>
    %cst_12 = arith.constant 0.000000e+00 : f32
    %30 = vector.shape_cast %29 : vector<1x24x1xi1> to vector<1x24x1xi1>
    %31 = vector.broadcast %30 : vector<1x24x1xi1> to vector<1x24x2xi1>
    %32 = vector.broadcast %cst_12 : f32 to vector<1x24x2xf32>
    %33 = arith.select %31, %26, %32 : vector<1x24x2xi1>, vector<1x24x2xf32>
    %34 = vector.shape_cast %33 : vector<1x24x2xf32> to vector<24x2xf32>
    %35 = tpu.concatenate %15, %24, %34 in 0 : vector<24x2xf32>, vector<96x2xf32>, vector<24x2xf32> -> vector<144x2xf32>
    %36 = vector.extract_strided_slice %35 {offsets = [143, 0], sizes = [1, 2], strides = [1, 1]} : vector<144x2xf32> to vector<1x2xf32>
    %37 = vector.extract_strided_slice %35 {offsets = [0, 0], sizes = [143, 2], strides = [1, 1]} : vector<144x2xf32> to vector<143x2xf32>
    %38 = tpu.concatenate %36, %37 in 0 : vector<1x2xf32>, vector<143x2xf32> -> vector<144x2xf32>
    %39 = vector.extract_strided_slice %35 {offsets = [1, 0], sizes = [143, 2], strides = [1, 1]} : vector<144x2xf32> to vector<143x2xf32>
    %40 = vector.extract_strided_slice %35 {offsets = [0, 0], sizes = [1, 2], strides = [1, 1]} : vector<144x2xf32> to vector<1x2xf32>
    %41 = tpu.concatenate %39, %40 in 0 : vector<143x2xf32>, vector<1x2xf32> -> vector<144x2xf32>
    %cst_13 = arith.constant 0.000000e+00 : f32
    %42 = vector.broadcast %cst_13 : f32 to vector<96x128xf32>
    %43 = vector.extract_strided_slice %38 {offsets = [0, 0], sizes = [96, 2], strides = [1, 1]} : vector<144x2xf32> to vector<96x2xf32>
    %c0_14 = arith.constant 0 : index
    %c0_15 = arith.constant 0 : index
    %c0_16 = arith.constant 0 : index
    %44 = vector.load %arg5[%c0_14, %c0_15, %c0_16] : memref<9x2x128xf32, #tpu.memory_space<vmem>>, vector<1x2x128xf32>
    %45 = vector.shape_cast %44 : vector<1x2x128xf32> to vector<2x128xf32>
    %cst_17 = arith.constant dense<0.000000e+00> : vector<96x128xf32>
    %46 = tpu.matmul %43, %45, %cst_17 {dimension_numbers = #tpu.dot_dimension_numbers<[1], [0], [0], [1], [0, 0, 1, 1], [], []>} : vector<96x2xf32>, vector<2x128xf32>, vector<96x128xf32> -> vector<96x128xf32>
    %47 = arith.addf %42, %46 : vector<96x128xf32>
    %48 = vector.extract_strided_slice %35 {offsets = [0, 0], sizes = [96, 2], strides = [1, 1]} : vector<144x2xf32> to vector<96x2xf32>
    %c1 = arith.constant 1 : index
    %c0_18 = arith.constant 0 : index
    %c0_19 = arith.constant 0 : index
    %49 = vector.load %arg5[%c1, %c0_18, %c0_19] : memref<9x2x128xf32, #tpu.memory_space<vmem>>, vector<1x2x128xf32>
    %50 = vector.shape_cast %49 : vector<1x2x128xf32> to vector<2x128xf32>
    %cst_20 = arith.constant dense<0.000000e+00> : vector<96x128xf32>
    %51 = tpu.matmul %48, %50, %cst_20 {dimension_numbers = #tpu.dot_dimension_numbers<[1], [0], [0], [1], [0, 0, 1, 1], [], []>} : vector<96x2xf32>, vector<2x128xf32>, vector<96x128xf32> -> vector<96x128xf32>
    %52 = arith.addf %47, %51 : vector<96x128xf32>
    %53 = vector.extract_strided_slice %41 {offsets = [0, 0], sizes = [96, 2], strides = [1, 1]} : vector<144x2xf32> to vector<96x2xf32>
    %c2 = arith.constant 2 : index
    %c0_21 = arith.constant 0 : index
    %c0_22 = arith.constant 0 : index
    %54 = vector.load %arg5[%c2, %c0_21, %c0_22] : memref<9x2x128xf32, #tpu.memory_space<vmem>>, vector<1x2x128xf32>
    %55 = vector.shape_cast %54 : vector<1x2x128xf32> to vector<2x128xf32>
    %cst_23 = arith.constant dense<0.000000e+00> : vector<96x128xf32>
    %56 = tpu.matmul %53, %55, %cst_23 {dimension_numbers = #tpu.dot_dimension_numbers<[1], [0], [0], [1], [0, 0, 1, 1], [], []>} : vector<96x2xf32>, vector<2x128xf32>, vector<96x128xf32> -> vector<96x128xf32>
    %57 = arith.addf %52, %56 : vector<96x128xf32>
    %58 = vector.extract_strided_slice %38 {offsets = [24, 0], sizes = [96, 2], strides = [1, 1]} : vector<144x2xf32> to vector<96x2xf32>
    %c3 = arith.constant 3 : index
    %c0_24 = arith.constant 0 : index
    %c0_25 = arith.constant 0 : index
    %59 = vector.load %arg5[%c3, %c0_24, %c0_25] : memref<9x2x128xf32, #tpu.memory_space<vmem>>, vector<1x2x128xf32>
    %60 = vector.shape_cast %59 : vector<1x2x128xf32> to vector<2x128xf32>
    %cst_26 = arith.constant dense<0.000000e+00> : vector<96x128xf32>
    %61 = tpu.matmul %58, %60, %cst_26 {dimension_numbers = #tpu.dot_dimension_numbers<[1], [0], [0], [1], [0, 0, 1, 1], [], []>} : vector<96x2xf32>, vector<2x128xf32>, vector<96x128xf32> -> vector<96x128xf32>
    %62 = arith.addf %57, %61 : vector<96x128xf32>
    %63 = vector.extract_strided_slice %35 {offsets = [24, 0], sizes = [96, 2], strides = [1, 1]} : vector<144x2xf32> to vector<96x2xf32>
    %c4 = arith.constant 4 : index
    %c0_27 = arith.constant 0 : index
    %c0_28 = arith.constant 0 : index
    %64 = vector.load %arg5[%c4, %c0_27, %c0_28] : memref<9x2x128xf32, #tpu.memory_space<vmem>>, vector<1x2x128xf32>
    %65 = vector.shape_cast %64 : vector<1x2x128xf32> to vector<2x128xf32>
    %cst_29 = arith.constant dense<0.000000e+00> : vector<96x128xf32>
    %66 = tpu.matmul %63, %65, %cst_29 {dimension_numbers = #tpu.dot_dimension_numbers<[1], [0], [0], [1], [0, 0, 1, 1], [], []>} : vector<96x2xf32>, vector<2x128xf32>, vector<96x128xf32> -> vector<96x128xf32>
    %67 = arith.addf %62, %66 : vector<96x128xf32>
    %68 = vector.extract_strided_slice %41 {offsets = [24, 0], sizes = [96, 2], strides = [1, 1]} : vector<144x2xf32> to vector<96x2xf32>
    %c5 = arith.constant 5 : index
    %c0_30 = arith.constant 0 : index
    %c0_31 = arith.constant 0 : index
    %69 = vector.load %arg5[%c5, %c0_30, %c0_31] : memref<9x2x128xf32, #tpu.memory_space<vmem>>, vector<1x2x128xf32>
    %70 = vector.shape_cast %69 : vector<1x2x128xf32> to vector<2x128xf32>
    %cst_32 = arith.constant dense<0.000000e+00> : vector<96x128xf32>
    %71 = tpu.matmul %68, %70, %cst_32 {dimension_numbers = #tpu.dot_dimension_numbers<[1], [0], [0], [1], [0, 0, 1, 1], [], []>} : vector<96x2xf32>, vector<2x128xf32>, vector<96x128xf32> -> vector<96x128xf32>
    %72 = arith.addf %67, %71 : vector<96x128xf32>
    %73 = vector.extract_strided_slice %38 {offsets = [48, 0], sizes = [96, 2], strides = [1, 1]} : vector<144x2xf32> to vector<96x2xf32>
    %c6 = arith.constant 6 : index
    %c0_33 = arith.constant 0 : index
    %c0_34 = arith.constant 0 : index
    %74 = vector.load %arg5[%c6, %c0_33, %c0_34] : memref<9x2x128xf32, #tpu.memory_space<vmem>>, vector<1x2x128xf32>
    %75 = vector.shape_cast %74 : vector<1x2x128xf32> to vector<2x128xf32>
    %cst_35 = arith.constant dense<0.000000e+00> : vector<96x128xf32>
    %76 = tpu.matmul %73, %75, %cst_35 {dimension_numbers = #tpu.dot_dimension_numbers<[1], [0], [0], [1], [0, 0, 1, 1], [], []>} : vector<96x2xf32>, vector<2x128xf32>, vector<96x128xf32> -> vector<96x128xf32>
    %77 = arith.addf %72, %76 : vector<96x128xf32>
    %78 = vector.extract_strided_slice %35 {offsets = [48, 0], sizes = [96, 2], strides = [1, 1]} : vector<144x2xf32> to vector<96x2xf32>
    %c7 = arith.constant 7 : index
    %c0_36 = arith.constant 0 : index
    %c0_37 = arith.constant 0 : index
    %79 = vector.load %arg5[%c7, %c0_36, %c0_37] : memref<9x2x128xf32, #tpu.memory_space<vmem>>, vector<1x2x128xf32>
    %80 = vector.shape_cast %79 : vector<1x2x128xf32> to vector<2x128xf32>
    %cst_38 = arith.constant dense<0.000000e+00> : vector<96x128xf32>
    %81 = tpu.matmul %78, %80, %cst_38 {dimension_numbers = #tpu.dot_dimension_numbers<[1], [0], [0], [1], [0, 0, 1, 1], [], []>} : vector<96x2xf32>, vector<2x128xf32>, vector<96x128xf32> -> vector<96x128xf32>
    %82 = arith.addf %77, %81 : vector<96x128xf32>
    %83 = vector.extract_strided_slice %41 {offsets = [48, 0], sizes = [96, 2], strides = [1, 1]} : vector<144x2xf32> to vector<96x2xf32>
    %c8 = arith.constant 8 : index
    %c0_39 = arith.constant 0 : index
    %c0_40 = arith.constant 0 : index
    %84 = vector.load %arg5[%c8, %c0_39, %c0_40] : memref<9x2x128xf32, #tpu.memory_space<vmem>>, vector<1x2x128xf32>
    %85 = vector.shape_cast %84 : vector<1x2x128xf32> to vector<2x128xf32>
    %cst_41 = arith.constant dense<0.000000e+00> : vector<96x128xf32>
    %86 = tpu.matmul %83, %85, %cst_41 {dimension_numbers = #tpu.dot_dimension_numbers<[1], [0], [0], [1], [0, 0, 1, 1], [], []>} : vector<96x2xf32>, vector<2x128xf32>, vector<96x128xf32> -> vector<96x128xf32>
    %87 = arith.addf %82, %86 : vector<96x128xf32>
    %c0_42 = arith.constant 0 : index
    %c0_43 = arith.constant 0 : index
    %88 = vector.load %arg6[%c0_42, %c0_43] : memref<1x128xf32, #tpu.memory_space<vmem>>, vector<1x128xf32>
    %89 = vector.broadcast %88 : vector<1x128xf32> to vector<96x128xf32>
    %90 = arith.addf %87, %89 : vector<96x128xf32>
    %91 = vector.shape_cast %90 : vector<96x128xf32> to vector<4x24x128xf32>
    %cst_44 = arith.constant 0.000000e+00 : f32
    %92 = vector.shape_cast %5 : vector<1x24x1xi1> to vector<1x24x1xi1>
    %93 = vector.broadcast %92 : vector<1x24x1xi1> to vector<4x24x128xi1>
    %94 = vector.broadcast %cst_44 : f32 to vector<4x24x128xf32>
    %95 = arith.select %93, %91, %94 : vector<4x24x128xi1>, vector<4x24x128xf32>
    %cst_45 = arith.constant dense<0.000000e+00> : vector<128xf32>
    %96 = vector.multi_reduction <add>, %95, %cst_45 [0, 1] : vector<4x24x128xf32> to vector<128xf32>
    %97 = vector.shape_cast %96 : vector<128xf32> to vector<1x1x128xf32>
    %98 = vector.shape_cast %97 : vector<1x1x128xf32> to vector<1x128xf32>
    %99 = arith.mulf %95, %91 : vector<4x24x128xf32>
    %cst_46 = arith.constant dense<0.000000e+00> : vector<128xf32>
    %100 = vector.multi_reduction <add>, %99, %cst_46 [0, 1] : vector<4x24x128xf32> to vector<128xf32>
    %101 = vector.shape_cast %100 : vector<128xf32> to vector<1x1x128xf32>
    %102 = vector.shape_cast %101 : vector<1x1x128xf32> to vector<1x128xf32>
    %103 = tpu.concatenate %98, %102 in 0 : vector<1x128xf32>, vector<1x128xf32> -> vector<2x128xf32>
    %104 = vector.extract_strided_slice %103 {offsets = [0, 0], sizes = [2, 16], strides = [1, 1]} : vector<2x128xf32> to vector<2x16xf32>
    %c0_47 = arith.constant 0 : index
    %c0_48 = arith.constant 0 : index
    %c0_49 = arith.constant 0 : index
    %c0_50 = arith.constant 0 : index
    %105 = vector.load %arg10[%c0_47, %c0_48, %c0_49, %c0_50] : memref<1x1x2x16xf32, #tpu.memory_space<vmem>>, vector<1x1x2x16xf32>
    %106 = vector.shape_cast %105 : vector<1x1x2x16xf32> to vector<2x16xf32>
    %107 = vector.shape_cast %104 : vector<2x16xf32> to vector<1x1x2x16xf32>
    tpu.vector_store %arg10[%c0_47, %c0_48, %c0_49, %c0_50], %107 {strides = array<i32>} : memref<1x1x2x16xf32, #tpu.memory_space<vmem>>, vector<1x1x2x16xf32>,
    %108 = vector.extract_strided_slice %91 {offsets = [0, 0, 0], sizes = [4, 24, 16], strides = [1, 1, 1]} : vector<4x24x128xf32> to vector<4x24x16xf32>
    %c0_51 = arith.constant 0 : index
    %c0_52 = arith.constant 0 : index
    %c0_53 = arith.constant 0 : index
    %c0_54 = arith.constant 0 : index
    %109 = vector.load %arg9[%c0_51, %c0_52, %c0_53, %c0_54] : memref<1x4x24x16xf32, #tpu.memory_space<vmem>>, vector<1x4x24x16xf32>
    %110 = vector.shape_cast %109 : vector<1x4x24x16xf32> to vector<4x24x16xf32>
    %111 = vector.shape_cast %108 : vector<4x24x16xf32> to vector<1x4x24x16xf32>
    tpu.vector_store %arg9[%c0_51, %c0_52, %c0_53, %c0_54], %111 {strides = array<i32>} : memref<1x4x24x16xf32, #tpu.memory_space<vmem>>, vector<1x4x24x16xf32>,
    return
  }
  func.func @transform_0(%arg0: i32, %arg1: i32) -> (i32, i32, i32, i32) {
    %c4_i32 = arith.constant 4 : i32
    %0 = arith.muli %arg1, %c4_i32 : i32
    %c1_i32 = arith.constant 1 : i32
    %1 = arith.subi %0, %c1_i32 : i32
    %c0_i32 = arith.constant 0 : i32
    %2 = arith.maxsi %1, %c0_i32 : i32
    %c0_i32_0 = arith.constant 0 : i32
    %c0_i32_1 = arith.constant 0 : i32
    %c0_i32_2 = arith.constant 0 : i32
    return %arg0, %2, %c0_i32_0, %c0_i32_1 : i32, i32, i32, i32
  }
  func.func @transform_1(%arg0: i32, %arg1: i32) -> (i32, i32, i32, i32) {
    %c0_i32 = arith.constant 0 : i32
    %c0_i32_0 = arith.constant 0 : i32
    %c0_i32_1 = arith.constant 0 : i32
    return %arg0, %arg1, %c0_i32, %c0_i32_0 : i32, i32, i32, i32
  }
  func.func @transform_2(%arg0: i32, %arg1: i32) -> (i32, i32, i32, i32) {
    %c1_i32 = arith.constant 1 : i32
    %0 = arith.addi %arg1, %c1_i32 : i32
    %c4_i32 = arith.constant 4 : i32
    %1 = arith.muli %0, %c4_i32 : i32
    %c15_i32 = arith.constant 15 : i32
    %2 = arith.minsi %1, %c15_i32 : i32
    %c0_i32 = arith.constant 0 : i32
    %c0_i32_0 = arith.constant 0 : i32
    %c0_i32_1 = arith.constant 0 : i32
    return %arg0, %2, %c0_i32, %c0_i32_0 : i32, i32, i32, i32
  }
  func.func @transform_3(%arg0: i32, %arg1: i32) -> (i32, i32, i32) {
    %c0_i32 = arith.constant 0 : i32
    %c0_i32_0 = arith.constant 0 : i32
    %c0_i32_1 = arith.constant 0 : i32
    %c0_i32_2 = arith.constant 0 : i32
    return %c0_i32, %c0_i32_0, %c0_i32_1 : i32, i32, i32
  }
  func.func @transform_4(%arg0: i32, %arg1: i32) -> (i32, i32) {
    %c0_i32 = arith.constant 0 : i32
    %c0_i32_0 = arith.constant 0 : i32
    %c0_i32_1 = arith.constant 0 : i32
    return %c0_i32, %c0_i32_0 : i32, i32
  }
  func.func @transform_5(%arg0: i32, %arg1: i32) -> (i32, i32) {
    %c0_i32 = arith.constant 0 : i32
    %c0_i32_0 = arith.constant 0 : i32
    %c0_i32_1 = arith.constant 0 : i32
    return %c0_i32, %c0_i32_0 : i32, i32
  }
  func.func @transform_6(%arg0: i32, %arg1: i32) -> (i32, i32) {
    %c0_i32 = arith.constant 0 : i32
    %c0_i32_0 = arith.constant 0 : i32
    %c0_i32_1 = arith.constant 0 : i32
    return %c0_i32, %c0_i32_0 : i32, i32
  }
  func.func @transform_7(%arg0: i32, %arg1: i32) -> (i32, i32, i32, i32) {
    %c0_i32 = arith.constant 0 : i32
    %c0_i32_0 = arith.constant 0 : i32
    %c0_i32_1 = arith.constant 0 : i32
    return %arg0, %arg1, %c0_i32, %c0_i32_0 : i32, i32, i32, i32
  }
  func.func @transform_8(%arg0: i32, %arg1: i32) -> (i32, i32, i32, i32) {
    %c0_i32 = arith.constant 0 : i32
    %c0_i32_0 = arith.constant 0 : i32
    %c0_i32_1 = arith.constant 0 : i32
    return %arg0, %arg1, %c0_i32, %c0_i32_0 : i32, i32, i32, i32
  }
}

</mosaic_0001>

<llo_original>
// kernel: tpu_custom_call.1
$region0: #{tpu_custom_call.1}
  #allocation0 [shape = 'u32[]', space=smem, size = 0x4, offset = 0x4, fixed_abs, tag = 'smem constant byte address 0x4 - core index']
  #allocation1 [shape = 'u32[144,128]{1,0:T(1,128)}', space=vmem, size = 0x12000, scoped, tag = 'internal scratch']
  %s0 = inlined_call_operand.vmem [shape: f32[24,2], index: 0, kind: input, shape index: {}]
  %s1 = inlined_call_operand.vmem [shape: f32[18,128], index: 1, kind: input, shape index: {}]
  %s2 = inlined_call_operand.hbm [shape: f32[8,128], index: 2, kind: output, shape index: {}]
  %s3 = sld [smem:[#allocation0]]
  $region18: #{tpu_custom_call.1} parent=0
    _
  %s5 = ssub.s32 1, %s3
  %s6 = scalar_select 0, %s5, %s3
  $region1: #{tpu_custom_call.1} parent=0
    #allocation2 [shape = 'u8[4096]{0}', space=vmem, size = 0x1000, scoped, tag = 'output window, operand 0, single buffered']
    #allocation3 [shape = 's32[1]{0}', space=sflag, size = 0x4, scoped, tag = 'scoped memory for tpu_custom_call.1']
    %7 = vsyncpa [#allocation3], 0
    // Predicated region
    $region2: #{tpu_custom_call.1} parent=1 // pred_check
      _
    $region3: #{tpu_custom_call.1} parent=1 // pred_check_branch
      %9 = sbr.rel (0) target = $region5
    $region4: #{tpu_custom_call.1} parent=1 // pred_region
      _
    $region5: #{tpu_custom_call.1} parent=1 // pred_fallthru
      _
    // Predicated region
    $region6: #{tpu_custom_call.1} parent=1 // pred_check
      _
    $region7: #{tpu_custom_call.1} parent=1 // pred_check_branch
      %11 = sbr.rel (0) target = $region9
    $region8: #{tpu_custom_call.1} parent=1 // pred_region
      _
    $region9: #{tpu_custom_call.1} parent=1 // pred_fallthru
      _
    %v12 = vld [vmem:[%s0] sm:$0xff]
    %v13 = vld [vmem:[%s0 + $0x8] sm:$0xff]
    %v14 = vld [vmem:[%s0 + $0x10] sm:$0xff]
    %18 = vrot.lane.b32.xlu0 %v12, 2
    %v19 = vpop.permute.xlu0 %18
    %20 = vrot.lane.b32.xlu0 %v13, 2
    %v21 = vpop.permute.xlu0 %20
    %22 = vrot.lane.b32.xlu0 %v14, 2
    %v23 = vpop.permute.xlu0 %22
    %27 = vrot.lane.b32.xlu0 %v12, 4
    %v28 = vpop.permute.xlu0 %27
    %29 = vrot.lane.b32.xlu0 %v13, 4
    %v30 = vpop.permute.xlu0 %29
    %31 = vrot.lane.b32.xlu0 %v14, 4
    %v32 = vpop.permute.xlu0 %31
    %vm36 = vcmask 15360
    %v37 = vsel %vm36, %v12, %v19
    %v38 = vsel %vm36, %v13, %v21
    %v39 = vsel %vm36, %v14, %v23
    %vm40 = vcmask 31744
    %v41 = vsel %vm40, %v37, %v28
    %v42 = vsel %vm40, %v38, %v30
    %v43 = vsel %vm40, %v39, %v32
    %45 = vrot.lane.b32.xlu0 %v42, 6
    %v46 = vpop.permute.xlu0 %45
    %49 = vrot.lane.b32.xlu0 %v43, 12
    %v50 = vpop.permute.xlu0 %49
    %vm52 = vcmask 48128
    %v53 = vsel %vm52, %v41, %v46
    %vm54 = vcmask 97280
    %v55 = vsel %vm54, %v53, %v50
    %v56 = vld [vmem:[%s1] sm:$0xff]
    %v57 = vld [vmem:[%s1 + $0x8] sm:$0xff]
    %v58 = vld [vmem:[%s1 + $0x10] sm:$0x3]
    %vm59 = vcmask 146432
    %v61 = vsel %vm59, %v55, 0
    %vm63 = vcmask 1041408
    %v65 = vsel %vm63, %v58, 0
    %67 = vmatprep.subr.mxu0 0.0
    %68 = vmatpush1.msra.mxu0 0.0
    %69 = vmatprep.subr.mxu0 0.0
    %70 = vmatpush1.msra.mxu0 0.0
    %71 = vmatprep.subr.mxu0 0.0
    %72 = vmatpush1.msra.mxu0 0.0
    %73 = vmatprep.subr.mxu0 0.0
    %74 = vmatpush1.msra.mxu0 0.0
    %75 = vmatprep.subr.mxu0 0.0
    %76 = vmatpush1.msra.mxu0 0.0
    %77 = vmatprep.subr.mxu0 0.0
    %78 = vmatpush1.msra.mxu0 0.0
    %79 = vmatprep.subr.mxu0 0.0
    %80 = vmatpush1.msra.mxu0 0.0
    %81 = vmatprep.subr.mxu0 0.0
    %82 = vmatpush1.msra.mxu0 0.0
    %83 = vmatprep.subr.mxu0 0.0
    %84 = vmatpush1.msra.mxu0 0.0
    %85 = vmatprep.subr.mxu0 0.0
    %86 = vmatpush1.msra.mxu0 0.0
    %87 = vmatprep.subr.mxu0 0.0
    %88 = vmatpush1.msra.mxu0 0.0
    %89 = vmatprep.subr.mxu0 0.0
    %90 = vmatpush1.msra.mxu0 0.0
    %91 = vmatprep.subr.mxu0 0.0
    %92 = vmatpush1.msra.mxu0 0.0
    %93 = vmatprep.subr.mxu0 0.0
    %94 = vmatpush1.msra.mxu0 %v65
    %95 = vmatprep.subr.mxu0 0.0
    %96 = vmatpush1.msra.mxu0 %v57
    %97 = vmatprep.subr.mxu0 0.0
    %98 = vmatpush1.msra.mxu0 %v56
    %99 = vmatprep.subr.mxu0 0.0
    %100 = vmatpush2.msra.mxu0 0.0
    %101 = vmatprep.subr.mxu0 0.0
    %102 = vmatpush2.msra.mxu0 0.0
    %103 = vmatprep.subr.mxu0 0.0
    %104 = vmatpush2.msra.mxu0 0.0
    %105 = vmatprep.subr.mxu0 0.0
    %106 = vmatpush2.msra.mxu0 0.0
    %107 = vmatprep.subr.mxu0 0.0
    %108 = vmatpush2.msra.mxu0 0.0
    %109 = vmatprep.subr.mxu0 0.0
    %110 = vmatpush2.msra.mxu0 0.0
    %111 = vmatprep.subr.mxu0 0.0
    %112 = vmatpush2.msra.mxu0 0.0
    %113 = vmatprep.subr.mxu0 0.0
    %114 = vmatpush2.msra.mxu0 0.0
    %115 = vmatprep.subr.mxu0 0.0
    %116 = vmatpush2.msra.mxu0 0.0
    %117 = vmatprep.subr.mxu0 0.0
    %118 = vmatpush2.msra.mxu0 0.0
    %119 = vmatprep.subr.mxu0 0.0
    %120 = vmatpush2.msra.mxu0 0.0
    %121 = vmatprep.subr.mxu0 0.0
    %122 = vmatpush2.msra.mxu0 0.0
    %123 = vmatprep.subr.mxu0 0.0
    %124 = vmatpush2.msra.mxu0 0.0
    %125 = vmatprep.subr.mxu0 0.0
    %126 = vmatpush2.msra.mxu0 0.0
    %127 = vmatprep.subr.mxu0 0.0
    %128 = vmatpush2.msra.mxu0 0.0
    %129 = vmatprep.subr.mxu0 0.0
    %130 = vmatpush2.msra.mxu0 0.0
    %131 = vmatprep.mubr.f32.mxu0 0.0
    %132 = vmatmul.mubr.f32.gmra.mxu0 %v61
    %v133 = vpop.f32.mrf.mxu0
    %v134 = vadd.f32 0.0, %v133
    %v135 = vpop.f32.mrf.mxu0
    %136 = vdwg.mxu0
    %137 = vst [vmem:[#allocation2] sm:$0xff] %v134
    // Predicated region
    $region10: #{tpu_custom_call.1} parent=1 // pred_check
      _
    $region11: #{tpu_custom_call.1} parent=1 // pred_check_branch
      %139 = sbr.rel (0) target = $region13
    $region12: #{tpu_custom_call.1} parent=1 // pred_region
      %s141 = ssub.s32 128, 128
      %142 = vsyncadd [#allocation3], %s141
      %s144 = sshll.u32 [#allocation2], 4
      %s145 = int_to_ptr.vmem [resolvable:$true] %s144
      %147 = dma.vmem_to_hbm [thread:$0]  %s145, 128, %s2, [#allocation3]
    $region13: #{tpu_custom_call.1} parent=1 // pred_fallthru
      _
    // Predicated region
    $region14: #{tpu_custom_call.1} parent=1 // pred_check
      _
    $region15: #{tpu_custom_call.1} parent=1 // pred_check_branch
      %149 = sbr.rel (0) target = $region17
    $region16: #{tpu_custom_call.1} parent=1 // pred_region
      %150 = dma.done [#allocation3], 128
    $region17: #{tpu_custom_call.1} parent=1 // pred_fallthru
      _
    %151 = vsyncpa [#allocation3], 1

// kernel: tpu_custom_call.1
$region0: #{tpu_custom_call.1}
  #allocation0 [shape = 'u32[]', space=smem, size = 0x4, offset = 0x4, fixed_abs, tag = 'smem constant byte address 0x4 - core index']
  #allocation1 [shape = 'u32[144,128]{1,0:T(1,128)}', space=vmem, size = 0x12000, scoped, tag = 'internal scratch']
  %s0 = inlined_call_operand.hbm [shape: f32[8,128], index: 0, kind: input, shape index: {}]
  %s1 = inlined_call_operand.hbm [shape: f32[16,128], index: 1, kind: output, shape index: {}]
  %s2 = sld [smem:[#allocation0]]
  $region41: #{tpu_custom_call.1} parent=0
    _
  %s4 = ssub.s32 1, %s2
  %s5 = scalar_select 0, %s4, %s2
  $region1: #{tpu_custom_call.1} parent=0
    #allocation2 [shape = 'u8[4096]{0}', space=vmem, size = 0x1000, scoped, tag = 'input window, operand 0, single buffered']
    #allocation3 [shape = 's32[2]{0}', space=sflag, size = 0x8, scoped, tag = 'scoped memory for tpu_custom_call.1']
    #allocation4 [shape = 's32[2]{0}', space=sflag, size = 0x8, scoped, tag = 'scoped memory for tpu_custom_call.1']
    #allocation5 [shape = 'u8[8192]{0}', space=vmem, size = 0x2000, scoped, tag = 'output window, operand 0']
    %6 = vsyncpa [#allocation3], 0
    %7 = vsyncpa [#allocation4], 0
    %s8 = scalar_lea.sflag [#allocation4], 1
    %9 = vsyncpa %s8, 0
    loop: start=0, step=1, limit=4
    $region2: #{tpu_custom_call.1} parent=1 // loop_pre_header
      _
    $region3: #{tpu_custom_call.1} parent=1 // loop_header
      %s11 = sphi 0, %s15
      %p12 = scmp.ge.s32.totalorder %s11, 4
      %s19 = sphi 0, %s19
      %s21 = sphi 0, %s19
      %s22 = sphi 0, %s21
      %s36 = sphi 0, %s22
      %s42 = sphi 0, %s44
      %s45 = sphi 0, %s42
      %s46 = sphi 0, %s45
      %s62 = sphi 0, %s46
    $region4: #{tpu_custom_call.1} parent=1 // loop_header_branch
      %14 = sbr.rel (%p12) target = $region8
    $region5: #{tpu_custom_call.1} parent=1 // loop_body
      %s16 = ssub.s32 %s11, 1
      %s17 = ssub.s32 %s11, 2
      %s18 = sadd.s32 %s11, 1
      %s20 = sadd.s32 %s19, 1
      %p23 = scmp.eq.s32.totalorder %s11, 1
      %p24 = scmp.ne.s32.totalorder %s19, %s21
      %p25 = scmp.eq.s32.totalorder %s11, 0
      %p26 = por %p24, %p25
      %p27 = scmp.ne.s32.totalorder %s19, %s21
      %p28 = scmp.eq.s32.totalorder %s16, 1
      %p29 = por %p27, %p28
      %p30 = scmp.ne.s32.totalorder %s21, %s22
      %p31 = scmp.eq.s32.totalorder %s16, 0
      %p32 = por %p30, %p31
      %p33 = scmp.ne.s32.totalorder %s21, %s22
      %p34 = scmp.eq.s32.totalorder %s17, 1
      %p35 = por %p33, %p34
      %p37 = scmp.ne.s32.totalorder %s22, %s36
      %p38 = scmp.eq.s32.totalorder %s17, 0
      %p39 = por %p37, %p38
      %s40 = ssub.s32 %s11, %s18
      %p41 = scmp.eq.s32.totalorder %s40, 0
      %s43 = sadd.s32 %s42, 1
      %s44 = scalar_select %p41, %s42, %s43
      %p47 = pneg %p41
      %p48 = scmp.eq.s32.totalorder %s11, 1
      %p49 = por %p47, %p48
      %p50 = scmp.ne.s32.totalorder %s42, %s45
      %p51 = scmp.eq.s32.totalorder %s11, 0
      %p52 = por %p50, %p51
      %p53 = scmp.ne.s32.totalorder %s42, %s45
      %p54 = scmp.eq.s32.totalorder %s16, 1
      %p55 = por %p53, %p54
      %p56 = scmp.ne.s32.totalorder %s45, %s46
      %p57 = scmp.eq.s32.totalorder %s16, 0
      %p58 = por %p56, %p57
      %p59 = scmp.ne.s32.totalorder %s45, %s46
      %p60 = scmp.eq.s32.totalorder %s17, 1
      %p61 = por %p59, %p60
      %p63 = scmp.ne.s32.totalorder %s46, %s62
      %p64 = scmp.eq.s32.totalorder %s17, 0
      %p65 = por %p63, %p64
      %p66 = scmp.le.s32.totalorder 1, %s11
      %p67 = scmp.lt.s32.totalorder %s11, 3
      %p68 = pnand %p66, %p67
      %p69 = pneg %p68
      // Predicated region
      $region9: #{tpu_custom_call.1} parent=5 // pred_check
        _
      $region10: #{tpu_custom_call.1} parent=5 // pred_check_branch
        %71 = sbr.rel (%p68) target = $region12
      $region11: #{tpu_custom_call.1} parent=5 // pred_region
        %s72 = ssub.s32 %s11, 1
        // Predicated region
        $region13: #{tpu_custom_call.1} parent=11 // pred_check
          %p73 = pneg %p32
        $region14: #{tpu_custom_call.1} parent=11 // pred_check_branch
          %75 = sbr.rel (%p73) target = $region16
        $region15: #{tpu_custom_call.1} parent=11 // pred_region
          %s77 = ssub.s32 128, 128
          %78 = vsyncadd [#allocation3], %s77
          %s80 = sshll.u32 [#allocation2], 4
          %s81 = int_to_ptr.vmem [resolvable:$true] %s80
          %83 = dma.hbm_to_vmem [thread:$0]  %s0, 128, %s81, [#allocation3]
        $region16: #{tpu_custom_call.1} parent=11 // pred_fallthru
          _
      $region12: #{tpu_custom_call.1} parent=5 // pred_fallthru
        _
      %p84 = scmp.lt.s32.totalorder %s11, 2
      // Predicated region
      $region17: #{tpu_custom_call.1} parent=5 // pred_check
        %p85 = pneg %p84
      $region18: #{tpu_custom_call.1} parent=5 // pred_check_branch
        %87 = sbr.rel (%p85) target = $region20
      $region19: #{tpu_custom_call.1} parent=5 // pred_region
        _
      $region20: #{tpu_custom_call.1} parent=5 // pred_fallthru
        _
      %p88 = scmp.le.s32.totalorder 1, %s11
      %p89 = scmp.lt.s32.totalorder %s11, 3
      %p90 = pnand %p88, %p89
      %p91 = pneg %p90
      // Predicated region
      $region21: #{tpu_custom_call.1} parent=5 // pred_check
        _
      $region22: #{tpu_custom_call.1} parent=5 // pred_check_branch
        %93 = sbr.rel (%p90) target = $region24
      $region23: #{tpu_custom_call.1} parent=5 // pred_region
        %s94 = ssub.s32 %s11, 1
        // Predicated region
        $region25: #{tpu_custom_call.1} parent=23 // pred_check
          %p95 = pneg %p32
        $region26: #{tpu_custom_call.1} parent=23 // pred_check_branch
          %97 = sbr.rel (%p95) target = $region28
        $region27: #{tpu_custom_call.1} parent=23 // pred_region
          %98 = dma.done [#allocation3], 128
        $region28: #{tpu_custom_call.1} parent=23 // pred_fallthru
          _
        %p99 = pneg %p32
        %p100 = pneg %p29
        %p101 = pneg %p58
        %p102 = pneg %p55
        %s103 = sand.u32 %s45, 1
        %s104 = scalar_lea.sflag [#allocation4], %s103
        %s105 = sand.u32 %s45, 1
        %s106 = smul.addr %s105, 8
        %s107 = scalar_lea.vmem [#allocation5], %s106
        %v108 = vld [vmem:[#allocation2] sm:$0xff]
        %v109 = vmul.f32 %v108, 2.0
        %110 = vst [vmem:[%s107] sm:$0xff] %v109
        %s111 = sand.u32 %s45, 1
        %s112 = scalar_lea.sflag [#allocation4], %s111
        %s113 = sand.u32 %s45, 1
        %s114 = smul.addr %s113, 8
        %s115 = scalar_lea.vmem [#allocation5], %s114
        // Predicated region
        $region29: #{tpu_custom_call.1} parent=23 // pred_check
          %p116 = pneg %p55
        $region30: #{tpu_custom_call.1} parent=23 // pred_check_branch
          %118 = sbr.rel (%p116) target = $region32
        $region31: #{tpu_custom_call.1} parent=23 // pred_region
          %s120 = ssub.s32 128, 128
          %121 = vsyncadd %s112, %s120
          %s122 = smul.addr %s16, 128
          %s123 = scalar_lea.hbm %s1, %s122
          %s125 = sshll.u32 %s115, 4
          %s126 = int_to_ptr.vmem [resolvable:$true] %s125
          %128 = dma.vmem_to_hbm [thread:$0]  %s126, 128, %s123, %s112
        $region32: #{tpu_custom_call.1} parent=23 // pred_fallthru
          _
      $region24: #{tpu_custom_call.1} parent=5 // pred_fallthru
        _
      %p129 = scmp.le.s32.totalorder 2, %s11
      // Predicated region
      $region33: #{tpu_custom_call.1} parent=5 // pred_check
        %p130 = pneg %p129
      $region34: #{tpu_custom_call.1} parent=5 // pred_check_branch
        %132 = sbr.rel (%p130) target = $region36
      $region35: #{tpu_custom_call.1} parent=5 // pred_region
        %s133 = ssub.s32 %s11, 2
        // Predicated region
        $region37: #{tpu_custom_call.1} parent=35 // pred_check
          %p134 = pneg %p61
        $region38: #{tpu_custom_call.1} parent=35 // pred_check_branch
          %136 = sbr.rel (%p134) target = $region40
        $region39: #{tpu_custom_call.1} parent=35 // pred_region
          %s137 = sand.u32 %s46, 1
          %s138 = scalar_lea.sflag [#allocation4], %s137
          %s139 = sand.u32 %s46, 1
          %s140 = smul.addr %s139, 8
          %s141 = scalar_lea.vmem [#allocation5], %s140
          %142 = dma.done %s138, 128
        $region40: #{tpu_custom_call.1} parent=35 // pred_fallthru
          _
      $region36: #{tpu_custom_call.1} parent=5 // pred_fallthru
        _
    $region6: #{tpu_custom_call.1} parent=1 // loop_footer
      %s15 = sadd.s32 1, %s11
    $region7: #{tpu_custom_call.1} parent=1 // loop_footer_branch
      %10 = sbr.rel target = $region3
    $region8: #{tpu_custom_call.1} parent=1 // loop_exit
      _
    %143 = vsyncpa [#allocation3], 1
    %s144 = scalar_lea.sflag [#allocation3], 1
    %145 = vsyncpa %s144, 1
    %146 = vsyncpa [#allocation4], 1
    %s147 = scalar_lea.sflag [#allocation4], 1
    %148 = vsyncpa %s147, 1

// kernel: tpu_custom_call.1
$region0: #{tpu_custom_call.1}
  #allocation0 [shape = 'u32[]', space=smem, size = 0x4, offset = 0x4, fixed_abs, tag = 'smem constant byte address 0x4 - core index']
  #allocation1 [shape = 'u32[144,128]{1,0:T(1,128)}', space=vmem, size = 0x12000, scoped, tag = 'internal scratch']
  %s0 = inlined_call_operand.vmem [shape: f32[2,16,24,2], index: 0, kind: input, shape index: {}]
  %s1 = inlined_call_operand.vmem [shape: f32[2,16,24,2], index: 1, kind: input, shape index: {}]
  %s2 = inlined_call_operand.vmem [shape: f32[2,16,24,2], index: 2, kind: input, shape index: {}]
  %s3 = inlined_call_operand.vmem [shape: f32[9,2,128], index: 3, kind: input, shape index: {}]
  %s4 = inlined_call_operand.vmem [shape: f32[1,128], index: 4, kind: input, shape index: {}]
  %s5 = inlined_call_operand.vmem [shape: f32[1,2], index: 5, kind: input, shape index: {}]
  %s6 = inlined_call_operand.vmem [shape: f32[1,2], index: 6, kind: input, shape index: {}]
  %s7 = inlined_call_operand.vmem [shape: f32[2,16,24,16], index: 7, kind: output, shape index: {0}]
  %s8 = inlined_call_operand.hbm [shape: f32[2,4,2,16], index: 8, kind: output, shape index: {1}]
  %9 = xla_tuple %s7, %s8
  %s10 = sld [smem:[#allocation0]]
  $region69: #{tpu_custom_call.1} parent=0
    _
  %s12 = ssub.s32 1, %s10
  %s13 = scalar_select 0, %s12, %s10
  $region1: #{tpu_custom_call.1} parent=0
    #allocation2 [shape = 'u8[2048]{0}', space=vmem, size = 0x800, scoped, tag = 'output window, operand 1']
    #allocation3 [shape = 's32[2]{0}', space=sflag, size = 0x8, scoped, tag = 'scoped memory for tpu_custom_call.1']
    %14 = vsyncpa [#allocation3], 0
    %s15 = scalar_lea.sflag [#allocation3], 1
    %16 = vsyncpa %s15, 0
    loop: start=0, step=1, limit=10
    $region2: #{tpu_custom_call.1} parent=1 // loop_pre_header
      _
    $region3: #{tpu_custom_call.1} parent=1 // loop_header
      %s18 = sphi 0, %s22
      %p19 = scmp.ge.s32.totalorder %s18, 10
      %s25 = sphi 0, %s37
      %s26 = sphi 0, %s33
      %s27 = sphi 0, %s25
      %s28 = sphi 0, %s26
      %s29 = sphi 0, %s27
      %s30 = sphi 0, %s28
      %s50 = sphi 0, %s52
      %s53 = sphi 0, %s50
      %s54 = sphi 0, %s53
      %s70 = sphi 0, %s54
      %s78 = sphi 0, %s80
      %s81 = sphi 0, %s78
      %s82 = sphi 0, %s81
      %s98 = sphi 0, %s82
      %s114 = sphi 0, %s116
      %s117 = sphi 0, %s114
      %s118 = sphi 0, %s117
      %s134 = sphi 0, %s118
      %s138 = sphi 0, %s138
      %s140 = sphi 0, %s138
      %s141 = sphi 0, %s140
      %s155 = sphi 0, %s141
      %s159 = sphi 0, %s159
      %s161 = sphi 0, %s159
      %s162 = sphi 0, %s161
      %s176 = sphi 0, %s162
      %s180 = sphi 0, %s180
      %s182 = sphi 0, %s180
      %s183 = sphi 0, %s182
      %s197 = sphi 0, %s183
      %s201 = sphi 0, %s201
      %s203 = sphi 0, %s201
      %s204 = sphi 0, %s203
      %s218 = sphi 0, %s204
      %s226 = sphi 0, %s228
      %s229 = sphi 0, %s226
      %s230 = sphi 0, %s229
      %s246 = sphi 0, %s230
      %s254 = sphi 0, %s256
      %s257 = sphi 0, %s254
      %s258 = sphi 0, %s257
      %s274 = sphi 0, %s258
    $region4: #{tpu_custom_call.1} parent=1 // loop_header_branch
      %21 = sbr.rel (%p19) target = $region8
    $region5: #{tpu_custom_call.1} parent=1 // loop_body
      %s23 = ssub.s32 %s18, 1
      %s24 = ssub.s32 %s18, 2
      %s31 = sadd.s32 1, %s26
      %p32 = scmp.ge.s32.totalorder %s31, 4
      %s33 = scalar_select %p32, 0, %s31
      %s34 = sadd.s32 1, %s25
      %s35 = scalar_select %p32, %s34, %s25
      %p36 = scmp.ge.s32.totalorder %s35, 2
      %s37 = scalar_select %p36, 0, %s35
      %s38 = smul.u32 %s26, 4
      %s39 = ssub.s32 %s38, 1
      %p40 = scmp.gt.s32.totalorder %s39, 0
      %s41 = scalar_select %p40, %s39, 0
      %s42 = smul.u32 %s33, 4
      %s43 = ssub.s32 %s42, 1
      %p44 = scmp.gt.s32.totalorder %s43, 0
      %s45 = scalar_select %p44, %s43, 0
      %s46 = ssub.s32 %s25, %s37
      %s47 = ssub.s32 %s41, %s45
      %s48 = sor.u32 %s46, %s47
      %p49 = scmp.eq.s32.totalorder %s48, 0
      %s51 = sadd.s32 %s50, 1
      %s52 = scalar_select %p49, %s50, %s51
      %p55 = pneg %p49
      %p56 = scmp.eq.s32.totalorder %s18, 7
      %p57 = por %p55, %p56
      %p58 = scmp.ne.s32.totalorder %s50, %s53
      %p59 = scmp.eq.s32.totalorder %s18, 0
      %p60 = por %p58, %p59
      %p61 = scmp.ne.s32.totalorder %s50, %s53
      %p62 = scmp.eq.s32.totalorder %s23, 7
      %p63 = por %p61, %p62
      %p64 = scmp.ne.s32.totalorder %s53, %s54
      %p65 = scmp.eq.s32.totalorder %s23, 0
      %p66 = por %p64, %p65
      %p67 = scmp.ne.s32.totalorder %s53, %s54
      %p68 = scmp.eq.s32.totalorder %s24, 7
      %p69 = por %p67, %p68
      %p71 = scmp.ne.s32.totalorder %s54, %s70
      %p72 = scmp.eq.s32.totalorder %s24, 0
      %p73 = por %p71, %p72
      %s74 = ssub.s32 %s25, %s37
      %s75 = ssub.s32 %s26, %s33
      %s76 = sor.u32 %s74, %s75
      %p77 = scmp.eq.s32.totalorder %s76, 0
      %s79 = sadd.s32 %s78, 1
      %s80 = scalar_select %p77, %s78, %s79
      %p83 = pneg %p77
      %p84 = scmp.eq.s32.totalorder %s18, 7
      %p85 = por %p83, %p84
      %p86 = scmp.ne.s32.totalorder %s78, %s81
      %p87 = scmp.eq.s32.totalorder %s18, 0
      %p88 = por %p86, %p87
      %p89 = scmp.ne.s32.totalorder %s78, %s81
      %p90 = scmp.eq.s32.totalorder %s23, 7
      %p91 = por %p89, %p90
      %p92 = scmp.ne.s32.totalorder %s81, %s82
      %p93 = scmp.eq.s32.totalorder %s23, 0
      %p94 = por %p92, %p93
      %p95 = scmp.ne.s32.totalorder %s81, %s82
      %p96 = scmp.eq.s32.totalorder %s24, 7
      %p97 = por %p95, %p96
      %p99 = scmp.ne.s32.totalorder %s82, %s98
      %p100 = scmp.eq.s32.totalorder %s24, 0
      %p101 = por %p99, %p100
      %s102 = sadd.s32 %s26, 1
      %s103 = smul.u32 %s102, 4
      %p104 = scmp.lt.s32.totalorder %s103, 15
      %s105 = scalar_select %p104, %s103, 15
      %s106 = sadd.s32 %s33, 1
      %s107 = smul.u32 %s106, 4
      %p108 = scmp.lt.s32.totalorder %s107, 15
      %s109 = scalar_select %p108, %s107, 15
      %s110 = ssub.s32 %s25, %s37
      %s111 = ssub.s32 %s105, %s109
      %s112 = sor.u32 %s110, %s111
      %p113 = scmp.eq.s32.totalorder %s112, 0
      %s115 = sadd.s32 %s114, 1
      %s116 = scalar_select %p113, %s114, %s115
      %p119 = pneg %p113
      %p120 = scmp.eq.s32.totalorder %s18, 7
      %p121 = por %p119, %p120
      %p122 = scmp.ne.s32.totalorder %s114, %s117
      %p123 = scmp.eq.s32.totalorder %s18, 0
      %p124 = por %p122, %p123
      %p125 = scmp.ne.s32.totalorder %s114, %s117
      %p126 = scmp.eq.s32.totalorder %s23, 7
      %p127 = por %p125, %p126
      %p128 = scmp.ne.s32.totalorder %s117, %s118
      %p129 = scmp.eq.s32.totalorder %s23, 0
      %p130 = por %p128, %p129
      %p131 = scmp.ne.s32.totalorder %s117, %s118
      %p132 = scmp.eq.s32.totalorder %s24, 7
      %p133 = por %p131, %p132
      %p135 = scmp.ne.s32.totalorder %s118, %s134
      %p136 = scmp.eq.s32.totalorder %s24, 0
      %p137 = por %p135, %p136
      %s139 = sadd.s32 %s138, 1
      %p142 = scmp.eq.s32.totalorder %s18, 7
      %p143 = scmp.ne.s32.totalorder %s138, %s140
      %p144 = scmp.eq.s32.totalorder %s18, 0
      %p145 = por %p143, %p144
      %p146 = scmp.ne.s32.totalorder %s138, %s140
      %p147 = scmp.eq.s32.totalorder %s23, 7
      %p148 = por %p146, %p147
      %p149 = scmp.ne.s32.totalorder %s140, %s141
      %p150 = scmp.eq.s32.totalorder %s23, 0
      %p151 = por %p149, %p150
      %p152 = scmp.ne.s32.totalorder %s140, %s141
      %p153 = scmp.eq.s32.totalorder %s24, 7
      %p154 = por %p152, %p153
      %p156 = scmp.ne.s32.totalorder %s141, %s155
      %p157 = scmp.eq.s32.totalorder %s24, 0
      %p158 = por %p156, %p157
      %s160 = sadd.s32 %s159, 1
      %p163 = scmp.eq.s32.totalorder %s18, 7
      %p164 = scmp.ne.s32.totalorder %s159, %s161
      %p165 = scmp.eq.s32.totalorder %s18, 0
      %p166 = por %p164, %p165
      %p167 = scmp.ne.s32.totalorder %s159, %s161
      %p168 = scmp.eq.s32.totalorder %s23, 7
      %p169 = por %p167, %p168
      %p170 = scmp.ne.s32.totalorder %s161, %s162
      %p171 = scmp.eq.s32.totalorder %s23, 0
      %p172 = por %p170, %p171
      %p173 = scmp.ne.s32.totalorder %s161, %s162
      %p174 = scmp.eq.s32.totalorder %s24, 7
      %p175 = por %p173, %p174
      %p177 = scmp.ne.s32.totalorder %s162, %s176
      %p178 = scmp.eq.s32.totalorder %s24, 0
      %p179 = por %p177, %p178
      %s181 = sadd.s32 %s180, 1
      %p184 = scmp.eq.s32.totalorder %s18, 7
      %p185 = scmp.ne.s32.totalorder %s180, %s182
      %p186 = scmp.eq.s32.totalorder %s18, 0
      %p187 = por %p185, %p186
      %p188 = scmp.ne.s32.totalorder %s180, %s182
      %p189 = scmp.eq.s32.totalorder %s23, 7
      %p190 = por %p188, %p189
      %p191 = scmp.ne.s32.totalorder %s182, %s183
      %p192 = scmp.eq.s32.totalorder %s23, 0
      %p193 = por %p191, %p192
      %p194 = scmp.ne.s32.totalorder %s182, %s183
      %p195 = scmp.eq.s32.totalorder %s24, 7
      %p196 = por %p194, %p195
      %p198 = scmp.ne.s32.totalorder %s183, %s197
      %p199 = scmp.eq.s32.totalorder %s24, 0
      %p200 = por %p198, %p199
      %s202 = sadd.s32 %s201, 1
      %p205 = scmp.eq.s32.totalorder %s18, 7
      %p206 = scmp.ne.s32.totalorder %s201, %s203
      %p207 = scmp.eq.s32.totalorder %s18, 0
      %p208 = por %p206, %p207
      %p209 = scmp.ne.s32.totalorder %s201, %s203
      %p210 = scmp.eq.s32.totalorder %s23, 7
      %p211 = por %p209, %p210
      %p212 = scmp.ne.s32.totalorder %s203, %s204
      %p213 = scmp.eq.s32.totalorder %s23, 0
      %p214 = por %p212, %p213
      %p215 = scmp.ne.s32.totalorder %s203, %s204
      %p216 = scmp.eq.s32.totalorder %s24, 7
      %p217 = por %p215, %p216
      %p219 = scmp.ne.s32.totalorder %s204, %s218
      %p220 = scmp.eq.s32.totalorder %s24, 0
      %p221 = por %p219, %p220
      %s222 = ssub.s32 %s25, %s37
      %s223 = ssub.s32 %s26, %s33
      %s224 = sor.u32 %s222, %s223
      %p225 = scmp.eq.s32.totalorder %s224, 0
      %s227 = sadd.s32 %s226, 1
      %s228 = scalar_select %p225, %s226, %s227
      %p231 = pneg %p225
      %p232 = scmp.eq.s32.totalorder %s18, 7
      %p233 = por %p231, %p232
      %p234 = scmp.ne.s32.totalorder %s226, %s229
      %p235 = scmp.eq.s32.totalorder %s18, 0
      %p236 = por %p234, %p235
      %p237 = scmp.ne.s32.totalorder %s226, %s229
      %p238 = scmp.eq.s32.totalorder %s23, 7
      %p239 = por %p237, %p238
      %p240 = scmp.ne.s32.totalorder %s229, %s230
      %p241 = scmp.eq.s32.totalorder %s23, 0
      %p242 = por %p240, %p241
      %p243 = scmp.ne.s32.totalorder %s229, %s230
      %p244 = scmp.eq.s32.totalorder %s24, 7
      %p245 = por %p243, %p244
      %p247 = scmp.ne.s32.totalorder %s230, %s246
      %p248 = scmp.eq.s32.totalorder %s24, 0
      %p249 = por %p247, %p248
      %s250 = ssub.s32 %s25, %s37
      %s251 = ssub.s32 %s26, %s33
      %s252 = sor.u32 %s250, %s251
      %p253 = scmp.eq.s32.totalorder %s252, 0
      %s255 = sadd.s32 %s254, 1
      %s256 = scalar_select %p253, %s254, %s255
      %p259 = pneg %p253
      %p260 = scmp.eq.s32.totalorder %s18, 7
      %p261 = por %p259, %p260
      %p262 = scmp.ne.s32.totalorder %s254, %s257
      %p263 = scmp.eq.s32.totalorder %s18, 0
      %p264 = por %p262, %p263
      %p265 = scmp.ne.s32.totalorder %s254, %s257
      %p266 = scmp.eq.s32.totalorder %s23, 7
      %p267 = por %p265, %p266
      %p268 = scmp.ne.s32.totalorder %s257, %s258
      %p269 = scmp.eq.s32.totalorder %s23, 0
      %p270 = por %p268, %p269
      %p271 = scmp.ne.s32.totalorder %s257, %s258
      %p272 = scmp.eq.s32.totalorder %s24, 7
      %p273 = por %p271, %p272
      %p275 = scmp.ne.s32.totalorder %s258, %s274
      %p276 = scmp.eq.s32.totalorder %s24, 0
      %p277 = por %p275, %p276
      %p278 = scmp.le.s32.totalorder 1, %s18
      %p279 = scmp.lt.s32.totalorder %s18, 9
      %p280 = pnand %p278, %p279
      %p281 = pneg %p280
      // Predicated region
      $region9: #{tpu_custom_call.1} parent=5 // pred_check
        _
      $region10: #{tpu_custom_call.1} parent=5 // pred_check_branch
        %283 = sbr.rel (%p280) target = $region12
      $region11: #{tpu_custom_call.1} parent=5 // pred_region
        %s284 = ssub.s32 %s18, 1
        // Predicated region
        $region13: #{tpu_custom_call.1} parent=11 // pred_check
          %p285 = pneg %p151
        $region14: #{tpu_custom_call.1} parent=11 // pred_check_branch
          %287 = sbr.rel (%p285) target = $region16
        $region15: #{tpu_custom_call.1} parent=11 // pred_region
          _
        $region16: #{tpu_custom_call.1} parent=11 // pred_fallthru
          _
        // Predicated region
        $region17: #{tpu_custom_call.1} parent=11 // pred_check
          %p288 = pneg %p172
        $region18: #{tpu_custom_call.1} parent=11 // pred_check_branch
          %290 = sbr.rel (%p288) target = $region20
        $region19: #{tpu_custom_call.1} parent=11 // pred_region
          _
        $region20: #{tpu_custom_call.1} parent=11 // pred_fallthru
          _
        // Predicated region
        $region21: #{tpu_custom_call.1} parent=11 // pred_check
          %p291 = pneg %p193
        $region22: #{tpu_custom_call.1} parent=11 // pred_check_branch
          %293 = sbr.rel (%p291) target = $region24
        $region23: #{tpu_custom_call.1} parent=11 // pred_region
          _
        $region24: #{tpu_custom_call.1} parent=11 // pred_fallthru
          _
        // Predicated region
        $region25: #{tpu_custom_call.1} parent=11 // pred_check
          %p294 = pneg %p214
        $region26: #{tpu_custom_call.1} parent=11 // pred_check_branch
          %296 = sbr.rel (%p294) target = $region28
        $region27: #{tpu_custom_call.1} parent=11 // pred_region
          _
        $region28: #{tpu_custom_call.1} parent=11 // pred_fallthru
          _
      $region12: #{tpu_custom_call.1} parent=5 // pred_fallthru
        _
      %p297 = scmp.lt.s32.totalorder %s18, 8
      // Predicated region
      $region29: #{tpu_custom_call.1} parent=5 // pred_check
        %p298 = pneg %p297
      $region30: #{tpu_custom_call.1} parent=5 // pred_check_branch
        %300 = sbr.rel (%p298) target = $region32
      $region31: #{tpu_custom_call.1} parent=5 // pred_region
        // Predicated region
        $region33: #{tpu_custom_call.1} parent=31 // pred_check
          %p301 = pneg %p60
        $region34: #{tpu_custom_call.1} parent=31 // pred_check_branch
          %303 = sbr.rel (%p301) target = $region36
        $region35: #{tpu_custom_call.1} parent=31 // pred_region
          %s304 = smul.u32 %s26, 4
          %s305 = ssub.s32 %s304, 1
          %p306 = scmp.gt.s32.totalorder %s305, 0
          %s307 = scalar_select %p306, %s305, 0
          %p308 = scmp.lt.s32.totalorder %s25, 1
          %s309 = scalar_select %p308, %s25, 1
          %p310 = scmp.lt.s32.totalorder %s307, 15
          %s311 = scalar_select %p310, %s307, 15
          %s312 = smul.addr %s311, 3
          %s313 = smul.addr %s309, 48
          %s314 = sadd.s32 %s312, %s313
          %s315 = smul.addr %s314, 8
          %s316 = scalar_lea.vmem %s0, %s315
          %s317 = smul.u32 %s26, 4
          %s318 = ssub.s32 %s317, 1
          %p319 = scmp.gt.s32.totalorder %s318, 0
          %s320 = scalar_select %p319, %s318, 0
        $region36: #{tpu_custom_call.1} parent=31 // pred_fallthru
          _
        // Predicated region
        $region37: #{tpu_custom_call.1} parent=31 // pred_check
          %p321 = pneg %p88
        $region38: #{tpu_custom_call.1} parent=31 // pred_check_branch
          %323 = sbr.rel (%p321) target = $region40
        $region39: #{tpu_custom_call.1} parent=31 // pred_region
          %s324 = smul.u32 4, %s26
          %p325 = scmp.lt.s32.totalorder %s25, 1
          %s326 = scalar_select %p325, %s25, 1
          %p327 = scmp.lt.s32.totalorder %s324, 15
          %s328 = scalar_select %p327, %s324, 15
          %s329 = smul.addr %s328, 3
          %s330 = smul.addr %s326, 48
          %s331 = sadd.s32 %s329, %s330
          %s332 = smul.addr %s331, 8
          %s333 = scalar_lea.vmem %s1, %s332
          %s334 = smul.u32 4, %s26
        $region40: #{tpu_custom_call.1} parent=31 // pred_fallthru
          _
        // Predicated region
        $region41: #{tpu_custom_call.1} parent=31 // pred_check
          %p335 = pneg %p124
        $region42: #{tpu_custom_call.1} parent=31 // pred_check_branch
          %337 = sbr.rel (%p335) target = $region44
        $region43: #{tpu_custom_call.1} parent=31 // pred_region
          %s338 = sadd.s32 %s26, 1
          %s339 = smul.u32 %s338, 4
          %p340 = scmp.lt.s32.totalorder %s339, 15
          %s341 = scalar_select %p340, %s339, 15
          %p342 = scmp.lt.s32.totalorder %s25, 1
          %s343 = scalar_select %p342, %s25, 1
          %p344 = scmp.lt.s32.totalorder %s341, 15
          %s345 = scalar_select %p344, %s341, 15
          %s346 = smul.addr %s345, 3
          %s347 = smul.addr %s343, 48
          %s348 = sadd.s32 %s346, %s347
          %s349 = smul.addr %s348, 8
          %s350 = scalar_lea.vmem %s2, %s349
          %s351 = sadd.s32 %s26, 1
          %s352 = smul.u32 %s351, 4
          %p353 = scmp.lt.s32.totalorder %s352, 15
          %s354 = scalar_select %p353, %s352, 15
        $region44: #{tpu_custom_call.1} parent=31 // pred_fallthru
          _
      $region32: #{tpu_custom_call.1} parent=5 // pred_fallthru
        _
      %p355 = scmp.le.s32.totalorder 1, %s18
      %p356 = scmp.lt.s32.totalorder %s18, 9
      %p357 = pnand %p355, %p356
      %p358 = pneg %p357
      // Predicated region
      $region45: #{tpu_custom_call.1} parent=5 // pred_check
        _
      $region46: #{tpu_custom_call.1} parent=5 // pred_check_branch
        %360 = sbr.rel (%p357) target = $region48
      $region47: #{tpu_custom_call.1} parent=5 // pred_region
        %s361 = ssub.s32 %s18, 1
        %s362 = smul.u32 %s28, 4
        %s363 = ssub.s32 %s362, 1
        %p364 = scmp.gt.s32.totalorder %s363, 0
        %s365 = scalar_select %p364, %s363, 0
        %p366 = scmp.lt.s32.totalorder %s27, 1
        %s367 = scalar_select %p366, %s27, 1
        %p368 = scmp.lt.s32.totalorder %s365, 15
        %s369 = scalar_select %p368, %s365, 15
        %s370 = smul.addr %s369, 3
        %s371 = smul.addr %s367, 48
        %s372 = sadd.s32 %s370, %s371
        %s373 = smul.addr %s372, 8
        %s374 = scalar_lea.vmem %s0, %s373
        %p375 = pneg %p66
        %p376 = pneg %p63
        %s377 = smul.u32 4, %s28
        %p378 = scmp.lt.s32.totalorder %s27, 1
        %s379 = scalar_select %p378, %s27, 1
        %p380 = scmp.lt.s32.totalorder %s377, 15
        %s381 = scalar_select %p380, %s377, 15
        %s382 = smul.addr %s381, 3
        %s383 = smul.addr %s379, 48
        %s384 = sadd.s32 %s382, %s383
        %s385 = smul.addr %s384, 8
        %s386 = scalar_lea.vmem %s1, %s385
        %p387 = pneg %p94
        %p388 = pneg %p91
        %s389 = sadd.s32 %s28, 1
        %s390 = smul.u32 %s389, 4
        %p391 = scmp.lt.s32.totalorder %s390, 15
        %s392 = scalar_select %p391, %s390, 15
        %p393 = scmp.lt.s32.totalorder %s27, 1
        %s394 = scalar_select %p393, %s27, 1
        %p395 = scmp.lt.s32.totalorder %s392, 15
        %s396 = scalar_select %p395, %s392, 15
        %s397 = smul.addr %s396, 3
        %s398 = smul.addr %s394, 48
        %s399 = sadd.s32 %s397, %s398
        %s400 = smul.addr %s399, 8
        %s401 = scalar_lea.vmem %s2, %s400
        %p402 = pneg %p130
        %p403 = pneg %p127
        %p404 = pneg %p151
        %p405 = pneg %p148
        %p406 = pneg %p172
        %p407 = pneg %p169
        %p408 = pneg %p193
        %p409 = pneg %p190
        %p410 = pneg %p214
        %p411 = pneg %p211
        %p412 = pneg %p242
        %p413 = pneg %p239
        %s414 = smul.u32 4, %s28
        %p415 = scmp.lt.s32.totalorder %s27, 1
        %s416 = scalar_select %p415, %s27, 1
        %p417 = scmp.lt.s32.totalorder %s414, 15
        %s418 = scalar_select %p417, %s414, 15
        %s419 = smul.addr %s418, 3
        %s420 = smul.addr %s416, 48
        %s421 = sadd.s32 %s419, %s420
        %s422 = smul.addr %s421, 8
        %s423 = scalar_lea.vmem %s7, %s422
        %p424 = pneg %p270
        %p425 = pneg %p267
        %s426 = sand.u32 %s257, 1
        %s427 = scalar_lea.sflag [#allocation3], %s426
        %s428 = sand.u32 %s257, 1
        %s429 = smul.addr %s428, 2
        %s430 = scalar_lea.vmem [#allocation2], %s429
        %s431 = smul.u32 %s28, 4
        %s432 = ssub.s32 %s431, 1
        %p433 = scmp.gt.s32.totalorder %s432, 0
        %s434 = scalar_select %p433, %s432, 0
        %p435 = scmp.lt.s32.totalorder %s27, 1
        %s436 = scalar_select %p435, %s27, 1
        %p437 = scmp.lt.s32.totalorder %s434, 15
        %s438 = scalar_select %p437, %s434, 15
        %s439 = smul.addr %s438, 3
        %s440 = smul.addr %s436, 48
        %s441 = sadd.s32 %s439, %s440
        %s442 = smul.addr %s441, 8
        %s443 = scalar_lea.vmem %s0, %s442
        %s444 = smul.u32 %s28, 4
        %s445 = ssub.s32 %s444, 1
        %p446 = scmp.gt.s32.totalorder %s445, 0
        %s447 = scalar_select %p446, %s445, 0
        %s448 = smul.u32 4, %s28
        %p449 = scmp.lt.s32.totalorder %s27, 1
        %s450 = scalar_select %p449, %s27, 1
        %p451 = scmp.lt.s32.totalorder %s448, 15
        %s452 = scalar_select %p451, %s448, 15
        %s453 = smul.addr %s452, 3
        %s454 = smul.addr %s450, 48
        %s455 = sadd.s32 %s453, %s454
        %s456 = smul.addr %s455, 8
        %s457 = scalar_lea.vmem %s1, %s456
        %s458 = smul.u32 4, %s28
        %s459 = sadd.s32 %s28, 1
        %s460 = smul.u32 %s459, 4
        %p461 = scmp.lt.s32.totalorder %s460, 15
        %s462 = scalar_select %p461, %s460, 15
        %p463 = scmp.lt.s32.totalorder %s27, 1
        %s464 = scalar_select %p463, %s27, 1
        %p465 = scmp.lt.s32.totalorder %s462, 15
        %s466 = scalar_select %p465, %s462, 15
        %s467 = smul.addr %s466, 3
        %s468 = smul.addr %s464, 48
        %s469 = sadd.s32 %s467, %s468
        %s470 = smul.addr %s469, 8
        %s471 = scalar_lea.vmem %s2, %s470
        %s472 = sadd.s32 %s28, 1
        %s473 = smul.u32 %s472, 4
        %p474 = scmp.lt.s32.totalorder %s473, 15
        %s475 = scalar_select %p474, %s473, 15
        %s476 = smul.u32 4, %s28
        %p477 = scmp.lt.s32.totalorder %s27, 1
        %s478 = scalar_select %p477, %s27, 1
        %p479 = scmp.lt.s32.totalorder %s476, 15
        %s480 = scalar_select %p479, %s476, 15
        %s481 = smul.addr %s480, 3
        %s482 = smul.addr %s478, 48
        %s483 = sadd.s32 %s481, %s482
        %s484 = smul.addr %s483, 8
        %s485 = scalar_lea.vmem %s7, %s484
        %s486 = smul.u32 4, %s28
        %v487 = vlaneseq
        %v488 = vshrl.u32 %v487, 7
        %v489 = vadd.s32 %v488, 8
        %v490 = vadd.s32 %v488, 16
        %vm491 = vcmp.ge.s32.totalorder %v488, 1
        %vm492 = vcmp.ge.s32.totalorder %v489, 1
        %vm493 = vcmp.ge.s32.totalorder %v490, 1
        %vm494 = vcmp.le.s32.totalorder %v488, 16
        %vm495 = vcmp.le.s32.totalorder %v489, 16
        %vm496 = vcmp.le.s32.totalorder %v490, 16
        %vm497 = vmand %vm491, %vm494
        %vm498 = vmand %vm492, %vm495
        %vm499 = vmand %vm493, %vm496
        %v500 = vld [vmem:[%s443] sm:$0xff]
        %v501 = vld [vmem:[%s443 + $0x8] sm:$0xff]
        %v502 = vld [vmem:[%s443 + $0x10] sm:$0xff]
        %p503 = scmp.gt.s32.totalorder %s28, 0
        %s504 = scalar_select %p503, 1, 0
        %v505 = vstv %s504
        %vm506 = vcmp.eq.s32.totalorder %v505, 1
        %vm507 = vmand %vm497, %vm506
        %vm508 = vmand %vm498, %vm506
        %vm509 = vmand %vm499, %vm506
        %v510 = vsel %vm507, 1, 0
        %v511 = vsel %vm508, 1, 0
        %v512 = vsel %vm509, 1, 0
        %vm513 = vcmp.eq.s32.totalorder %v510, 1
        %vm514 = vcmp.eq.s32.totalorder %v511, 1
        %vm515 = vcmp.eq.s32.totalorder %v512, 1
        %v516 = vsel %vm513, %v500, 0.0
        %v517 = vsel %vm514, %v501, 0.0
        %v518 = vsel %vm515, %v502, 0.0
        %v519 = vld [vmem:[%s457] sm:$0xff]
        %v520 = vld [vmem:[%s457 + $0x8] sm:$0xff]
        %v521 = vld [vmem:[%s457 + $0x10] sm:$0xff]
        %v522 = vld [vmem:[%s457 + $0x18] sm:$0xff]
        %v523 = vld [vmem:[%s457 + $0x20] sm:$0xff]
        %v524 = vld [vmem:[%s457 + $0x28] sm:$0xff]
        %v525 = vld [vmem:[%s457 + $0x30] sm:$0xff]
        %v526 = vld [vmem:[%s457 + $0x38] sm:$0xff]
        %v527 = vld [vmem:[%s457 + $0x40] sm:$0xff]
        %v528 = vld [vmem:[%s457 + $0x48] sm:$0xff]
        %v529 = vld [vmem:[%s457 + $0x50] sm:$0xff]
        %v530 = vld [vmem:[%s457 + $0x58] sm:$0xff]
        %v531 = vsel %vm497, 1, 0
        %v532 = vsel %vm498, 1, 0
        %v533 = vsel %vm499, 1, 0
        %vm534 = vcmp.eq.s32.totalorder %v531, 1
        %vm535 = vcmp.eq.s32.totalorder %v532, 1
        %vm536 = vcmp.eq.s32.totalorder %v533, 1
        %v537 = vsel %vm534, %v519, 0.0
        %v538 = vsel %vm535, %v520, 0.0
        %v539 = vsel %vm536, %v521, 0.0
        %v540 = vsel %vm534, %v522, 0.0
        %v541 = vsel %vm535, %v523, 0.0
        %v542 = vsel %vm536, %v524, 0.0
        %v543 = vsel %vm534, %v525, 0.0
        %v544 = vsel %vm535, %v526, 0.0
        %v545 = vsel %vm536, %v527, 0.0
        %v546 = vsel %vm534, %v528, 0.0
        %v547 = vsel %vm535, %v529, 0.0
        %v548 = vsel %vm536, %v530, 0.0
        %v549 = vld [vmem:[%s471] sm:$0xff]
        %v550 = vld [vmem:[%s471 + $0x8] sm:$0xff]
        %v551 = vld [vmem:[%s471 + $0x10] sm:$0xff]
        %p552 = scmp.lt.s32.totalorder %s28, 3
        %s553 = scalar_select %p552, 1, 0
        %v554 = vstv %s553
        %vm555 = vcmp.eq.s32.totalorder %v554, 1
        %vm556 = vmand %vm497, %vm555
        %vm557 = vmand %vm498, %vm555
        %vm558 = vmand %vm499, %vm555
        %v559 = vsel %vm556, 1, 0
        %v560 = vsel %vm557, 1, 0
        %v561 = vsel %vm558, 1, 0
        %vm562 = vcmp.eq.s32.totalorder %v559, 1
        %vm563 = vcmp.eq.s32.totalorder %v560, 1
        %vm564 = vcmp.eq.s32.totalorder %v561, 1
        %v565 = vsel %vm562, %v549, 0.0
        %v566 = vsel %vm563, %v550, 0.0
        %v567 = vsel %vm564, %v551, 0.0
        %v569 = vrot.slane %v567, 7
        %vm588 = vcmask 1040384
        %v589 = vrot.slane %v516, 7
        %v590 = vrot.slane %v517, 7
        %v591 = vsel %vm588, %v589, %v590
        %v592 = vrot.slane %v518, 7
        %v593 = vsel %vm588, %v590, %v592
        %v594 = vrot.slane %v537, 7
        %v595 = vsel %vm588, %v592, %v594
        %v596 = vrot.slane %v538, 7
        %v597 = vsel %vm588, %v594, %v596
        %v598 = vrot.slane %v539, 7
        %v599 = vsel %vm588, %v596, %v598
        %v600 = vrot.slane %v540, 7
        %v601 = vsel %vm588, %v598, %v600
        %v602 = vrot.slane %v541, 7
        %v603 = vsel %vm588, %v600, %v602
        %v604 = vrot.slane %v542, 7
        %v605 = vsel %vm588, %v602, %v604
        %v606 = vrot.slane %v543, 7
        %v607 = vsel %vm588, %v604, %v606
        %v608 = vrot.slane %v544, 7
        %v609 = vsel %vm588, %v606, %v608
        %v610 = vrot.slane %v545, 7
        %v611 = vsel %vm588, %v608, %v610
        %v612 = vrot.slane %v546, 7
        %v613 = vsel %vm588, %v610, %v612
        %v614 = vrot.slane %v547, 7
        %v615 = vsel %vm588, %v612, %v614
        %v616 = vrot.slane %v548, 7
        %v617 = vsel %vm588, %v614, %v616
        %v618 = vrot.slane %v565, 7
        %v619 = vsel %vm588, %v616, %v618
        %v620 = vrot.slane %v566, 7
        %v621 = vsel %vm588, %v618, %v620
        %v622 = vsel %vm588, %v620, %v569
        %v624 = vsel %vm588, %v569, %v589
        %vm625 = vcmask 1046528
        %v626 = vrot.slane %v516, 1
        %v627 = vrot.slane %v517, 1
        %v628 = vsel %vm625, %v626, %v627
        %v629 = vrot.slane %v518, 1
        %v630 = vsel %vm625, %v627, %v629
        %v631 = vrot.slane %v537, 1
        %v632 = vsel %vm625, %v629, %v631
        %v633 = vrot.slane %v538, 1
        %v634 = vsel %vm625, %v631, %v633
        %v635 = vrot.slane %v539, 1
        %v636 = vsel %vm625, %v633, %v635
        %v637 = vrot.slane %v540, 1
        %v638 = vsel %vm625, %v635, %v637
        %v639 = vrot.slane %v541, 1
        %v640 = vsel %vm625, %v637, %v639
        %v641 = vrot.slane %v542, 1
        %v642 = vsel %vm625, %v639, %v641
        %v643 = vrot.slane %v543, 1
        %v644 = vsel %vm625, %v641, %v643
        %v645 = vrot.slane %v544, 1
        %v646 = vsel %vm625, %v643, %v645
        %v647 = vrot.slane %v545, 1
        %v648 = vsel %vm625, %v645, %v647
        %v649 = vrot.slane %v546, 1
        %v650 = vsel %vm625, %v647, %v649
        %v651 = vrot.slane %v547, 1
        %v652 = vsel %vm625, %v649, %v651
        %v653 = vrot.slane %v548, 1
        %v654 = vsel %vm625, %v651, %v653
        %v655 = vrot.slane %v565, 1
        %v656 = vsel %vm625, %v653, %v655
        %v657 = vrot.slane %v566, 1
        %v658 = vsel %vm625, %v655, %v657
        %v659 = vrot.slane %v567, 1
        %v660 = vsel %vm625, %v657, %v659
        %v663 = vsel %vm625, %v659, %v626
        %v664 = vld [vmem:[%s3] sm:$0x3]
        %s665 = scalar_lea.vmem %s3, 2
        %v666 = vld [vmem:[%s665] sm:$0x3]
        %vm667 = vcmask 15360
        %v668 = vsel %vm667, %v516, 0
        %v670 = vsel %vm667, %v517, 0
        %v672 = vsel %vm667, %v518, 0
        %v674 = vsel %vm667, %v537, 0
        %v676 = vsel %vm667, %v538, 0
        %v678 = vsel %vm667, %v539, 0
        %v680 = vsel %vm667, %v540, 0
        %v682 = vsel %vm667, %v541, 0
        %v684 = vsel %vm667, %v542, 0
        %v686 = vsel %vm667, %v543, 0
        %v688 = vsel %vm667, %v544, 0
        %v690 = vsel %vm667, %v545, 0
        %vm692 = vcmask 1041408
        %v694 = vsel %vm692, %v666, 0
        %696 = vmatprep.subr.mxu0 0.0
        %697 = vmatpush1.msra.mxu0 0.0
        %698 = vmatprep.subr.mxu0 0.0
        %699 = vmatpush1.msra.mxu0 0.0
        %700 = vmatprep.subr.mxu0 0.0
        %701 = vmatpush1.msra.mxu0 0.0
        %702 = vmatprep.subr.mxu0 0.0
        %703 = vmatpush1.msra.mxu0 0.0
        %704 = vmatprep.subr.mxu0 0.0
        %705 = vmatpush1.msra.mxu0 0.0
        %706 = vmatprep.subr.mxu0 0.0
        %707 = vmatpush1.msra.mxu0 0.0
        %708 = vmatprep.subr.mxu0 0.0
        %709 = vmatpush1.msra.mxu0 0.0
        %710 = vmatprep.subr.mxu0 0.0
        %711 = vmatpush1.msra.mxu0 0.0
        %712 = vmatprep.subr.mxu0 0.0
        %713 = vmatpush1.msra.mxu0 0.0
        %714 = vmatprep.subr.mxu0 0.0
        %715 = vmatpush1.msra.mxu0 0.0
        %716 = vmatprep.subr.mxu0 0.0
        %717 = vmatpush1.msra.mxu0 0.0
        %718 = vmatprep.subr.mxu0 0.0
        %719 = vmatpush1.msra.mxu0 0.0
        %720 = vmatprep.subr.mxu0 0.0
        %721 = vmatpush1.msra.mxu0 0.0
        %722 = vmatprep.subr.mxu0 0.0
        %723 = vmatpush1.msra.mxu0 0.0
        %724 = vmatprep.subr.mxu0 0.0
        %725 = vmatpush1.msra.mxu0 0.0
        %726 = vmatprep.subr.mxu0 0.0
        %727 = vmatpush1.msra.mxu0 %v694
        %728 = vmatprep.subr.mxu0 0.0
        %729 = vmatpush2.msra.mxu0 0.0
        %730 = vmatprep.subr.mxu0 0.0
        %731 = vmatpush2.msra.mxu0 0.0
        %732 = vmatprep.subr.mxu0 0.0
        %733 = vmatpush2.msra.mxu0 0.0
        %734 = vmatprep.subr.mxu0 0.0
        %735 = vmatpush2.msra.mxu0 0.0
        %736 = vmatprep.subr.mxu0 0.0
        %737 = vmatpush2.msra.mxu0 0.0
        %738 = vmatprep.subr.mxu0 0.0
        %739 = vmatpush2.msra.mxu0 0.0
        %740 = vmatprep.subr.mxu0 0.0
        %741 = vmatpush2.msra.mxu0 0.0
        %742 = vmatprep.subr.mxu0 0.0
        %743 = vmatpush2.msra.mxu0 0.0
        %744 = vmatprep.subr.mxu0 0.0
        %745 = vmatpush2.msra.mxu0 0.0
        %746 = vmatprep.subr.mxu0 0.0
        %747 = vmatpush2.msra.mxu0 0.0
        %748 = vmatprep.subr.mxu0 0.0
        %749 = vmatpush2.msra.mxu0 0.0
        %750 = vmatprep.subr.mxu0 0.0
        %751 = vmatpush2.msra.mxu0 0.0
        %752 = vmatprep.subr.mxu0 0.0
        %753 = vmatpush2.msra.mxu0 0.0
        %754 = vmatprep.subr.mxu0 0.0
        %755 = vmatpush2.msra.mxu0 0.0
        %756 = vmatprep.subr.mxu0 0.0
        %757 = vmatpush2.msra.mxu0 0.0
        %758 = vmatprep.subr.mxu0 0.0
        %759 = vmatpush2.msra.mxu0 0.0
        %760 = vmatprep.mubr.f32.mxu0 0.0
        %761 = vmatmul.mubr.f32.gmra.mxu0 %v668
        %v762 = vpop.f32.mrf.mxu0
        %v763 = vadd.f32 0.0, %v762
        %v764 = vpop.f32.mrf.mxu0
        %765 = vmatprep.mubr.f32.mxu0 0.0
        %766 = vmatmul.mubr.f32.gmra.mxu0 %v670
        %v767 = vpop.f32.mrf.mxu0
        %v768 = vadd.f32 0.0, %v767
        %v769 = vpop.f32.mrf.mxu0
        %770 = vmatprep.mubr.f32.mxu0 0.0
        %771 = vmatmul.mubr.f32.gmra.mxu0 %v672
        %v772 = vpop.f32.mrf.mxu0
        %v773 = vadd.f32 0.0, %v772
        %v774 = vpop.f32.mrf.mxu0
        %775 = vmatprep.mubr.f32.mxu0 0.0
        %776 = vmatmul.mubr.f32.gmra.mxu0 %v674
        %v777 = vpop.f32.mrf.mxu0
        %v778 = vadd.f32 0.0, %v777
        %v779 = vpop.f32.mrf.mxu0
        %780 = vmatprep.mubr.f32.mxu0 0.0
        %781 = vmatmul.mubr.f32.gmra.mxu0 %v676
        %v782 = vpop.f32.mrf.mxu0
        %v783 = vadd.f32 0.0, %v782
        %v784 = vpop.f32.mrf.mxu0
        %785 = vmatprep.mubr.f32.mxu0 0.0
        %786 = vmatmul.mubr.f32.gmra.mxu0 %v678
        %v787 = vpop.f32.mrf.mxu0
        %v788 = vadd.f32 0.0, %v787
        %v789 = vpop.f32.mrf.mxu0
        %790 = vmatprep.mubr.f32.mxu0 0.0
        %791 = vmatmul.mubr.f32.gmra.mxu0 %v680
        %v792 = vpop.f32.mrf.mxu0
        %v793 = vadd.f32 0.0, %v792
        %v794 = vpop.f32.mrf.mxu0
        %795 = vmatprep.mubr.f32.mxu0 0.0
        %796 = vmatmul.mubr.f32.gmra.mxu0 %v682
        %v797 = vpop.f32.mrf.mxu0
        %v798 = vadd.f32 0.0, %v797
        %v799 = vpop.f32.mrf.mxu0
        %800 = vmatprep.mubr.f32.mxu0 0.0
        %801 = vmatmul.mubr.f32.gmra.mxu0 %v684
        %v802 = vpop.f32.mrf.mxu0
        %v803 = vadd.f32 0.0, %v802
        %v804 = vpop.f32.mrf.mxu0
        %805 = vmatprep.mubr.f32.mxu0 0.0
        %806 = vmatmul.mubr.f32.gmra.mxu0 %v686
        %v807 = vpop.f32.mrf.mxu0
        %v808 = vadd.f32 0.0, %v807
        %v809 = vpop.f32.mrf.mxu0
        %810 = vmatprep.mubr.f32.mxu0 0.0
        %811 = vmatmul.mubr.f32.gmra.mxu0 %v688
        %v812 = vpop.f32.mrf.mxu0
        %v813 = vadd.f32 0.0, %v812
        %v814 = vpop.f32.mrf.mxu0
        %815 = vmatprep.mubr.f32.mxu0 0.0
        %816 = vmatmul.mubr.f32.gmra.mxu0 %v690
        %v817 = vpop.f32.mrf.mxu0
        %v818 = vadd.f32 0.0, %v817
        %v819 = vpop.f32.mrf.mxu0
        %820 = vdwg.mxu0
        %v822 = vsel %vm667, %v624, 0
        %v824 = vsel %vm667, %v591, 0
        %v826 = vsel %vm667, %v593, 0
        %v828 = vsel %vm667, %v595, 0
        %v830 = vsel %vm667, %v597, 0
        %v832 = vsel %vm667, %v599, 0
        %v834 = vsel %vm667, %v601, 0
        %v836 = vsel %vm667, %v603, 0
        %v838 = vsel %vm667, %v605, 0
        %v840 = vsel %vm667, %v607, 0
        %v842 = vsel %vm667, %v609, 0
        %v844 = vsel %vm667, %v611, 0
        %v847 = vsel %vm692, %v664, 0
        %849 = vmatprep.subr.mxu0 0.0
        %850 = vmatpush1.msra.mxu0 0.0
        %851 = vmatprep.subr.mxu0 0.0
        %852 = vmatpush1.msra.mxu0 0.0
        %853 = vmatprep.subr.mxu0 0.0
        %854 = vmatpush1.msra.mxu0 0.0
        %855 = vmatprep.subr.mxu0 0.0
        %856 = vmatpush1.msra.mxu0 0.0
        %857 = vmatprep.subr.mxu0 0.0
        %858 = vmatpush1.msra.mxu0 0.0
        %859 = vmatprep.subr.mxu0 0.0
        %860 = vmatpush1.msra.mxu0 0.0
        %861 = vmatprep.subr.mxu0 0.0
        %862 = vmatpush1.msra.mxu0 0.0
        %863 = vmatprep.subr.mxu0 0.0
        %864 = vmatpush1.msra.mxu0 0.0
        %865 = vmatprep.subr.mxu0 0.0
        %866 = vmatpush1.msra.mxu0 0.0
        %867 = vmatprep.subr.mxu0 0.0
        %868 = vmatpush1.msra.mxu0 0.0
        %869 = vmatprep.subr.mxu0 0.0
        %870 = vmatpush1.msra.mxu0 0.0
        %871 = vmatprep.subr.mxu0 0.0
        %872 = vmatpush1.msra.mxu0 0.0
        %873 = vmatprep.subr.mxu0 0.0
        %874 = vmatpush1.msra.mxu0 0.0
        %875 = vmatprep.subr.mxu0 0.0
        %876 = vmatpush1.msra.mxu0 0.0
        %877 = vmatprep.subr.mxu0 0.0
        %878 = vmatpush1.msra.mxu0 0.0
        %879 = vmatprep.subr.mxu0 0.0
        %880 = vmatpush1.msra.mxu0 %v847
        %881 = vmatprep.subr.mxu0 0.0
        %882 = vmatpush2.msra.mxu0 0.0
        %883 = vmatprep.subr.mxu0 0.0
        %884 = vmatpush2.msra.mxu0 0.0
        %885 = vmatprep.subr.mxu0 0.0
        %886 = vmatpush2.msra.mxu0 0.0
        %887 = vmatprep.subr.mxu0 0.0
        %888 = vmatpush2.msra.mxu0 0.0
        %889 = vmatprep.subr.mxu0 0.0
        %890 = vmatpush2.msra.mxu0 0.0
        %891 = vmatprep.subr.mxu0 0.0
        %892 = vmatpush2.msra.mxu0 0.0
        %893 = vmatprep.subr.mxu0 0.0
        %894 = vmatpush2.msra.mxu0 0.0
        %895 = vmatprep.subr.mxu0 0.0
        %896 = vmatpush2.msra.mxu0 0.0
        %897 = vmatprep.subr.mxu0 0.0
        %898 = vmatpush2.msra.mxu0 0.0
        %899 = vmatprep.subr.mxu0 0.0
        %900 = vmatpush2.msra.mxu0 0.0
        %901 = vmatprep.subr.mxu0 0.0
        %902 = vmatpush2.msra.mxu0 0.0
        %903 = vmatprep.subr.mxu0 0.0
        %904 = vmatpush2.msra.mxu0 0.0
        %905 = vmatprep.subr.mxu0 0.0
        %906 = vmatpush2.msra.mxu0 0.0
        %907 = vmatprep.subr.mxu0 0.0
        %908 = vmatpush2.msra.mxu0 0.0
        %909 = vmatprep.subr.mxu0 0.0
        %910 = vmatpush2.msra.mxu0 0.0
        %911 = vmatprep.subr.mxu0 0.0
        %912 = vmatpush2.msra.mxu0 0.0
        %913 = vmatprep.mubr.f32.mxu0 0.0
        %914 = vmatmul.mubr.f32.gmra.mxu0 %v822
        %v915 = vpop.f32.mrf.mxu0
        %v916 = vadd.f32 %v763, %v915
        %v917 = vpop.f32.mrf.mxu0
        %918 = vmatprep.mubr.f32.mxu0 0.0
        %919 = vmatmul.mubr.f32.gmra.mxu0 %v824
        %v920 = vpop.f32.mrf.mxu0
        %v921 = vadd.f32 %v768, %v920
        %v922 = vpop.f32.mrf.mxu0
        %923 = vmatprep.mubr.f32.mxu0 0.0
        %924 = vmatmul.mubr.f32.gmra.mxu0 %v826
        %v925 = vpop.f32.mrf.mxu0
        %v926 = vadd.f32 %v773, %v925
        %v927 = vpop.f32.mrf.mxu0
        %928 = vmatprep.mubr.f32.mxu0 0.0
        %929 = vmatmul.mubr.f32.gmra.mxu0 %v828
        %v930 = vpop.f32.mrf.mxu0
        %v931 = vadd.f32 %v778, %v930
        %v932 = vpop.f32.mrf.mxu0
        %933 = vmatprep.mubr.f32.mxu0 0.0
        %934 = vmatmul.mubr.f32.gmra.mxu0 %v830
        %v935 = vpop.f32.mrf.mxu0
        %v936 = vadd.f32 %v783, %v935
        %v937 = vpop.f32.mrf.mxu0
        %938 = vmatprep.mubr.f32.mxu0 0.0
        %939 = vmatmul.mubr.f32.gmra.mxu0 %v832
        %v940 = vpop.f32.mrf.mxu0
        %v941 = vadd.f32 %v788, %v940
        %v942 = vpop.f32.mrf.mxu0
        %943 = vmatprep.mubr.f32.mxu0 0.0
        %944 = vmatmul.mubr.f32.gmra.mxu0 %v834
        %v945 = vpop.f32.mrf.mxu0
        %v946 = vadd.f32 %v793, %v945
        %v947 = vpop.f32.mrf.mxu0
        %948 = vmatprep.mubr.f32.mxu0 0.0
        %949 = vmatmul.mubr.f32.gmra.mxu0 %v836
        %v950 = vpop.f32.mrf.mxu0
        %v951 = vadd.f32 %v798, %v950
        %v952 = vpop.f32.mrf.mxu0
        %953 = vmatprep.mubr.f32.mxu0 0.0
        %954 = vmatmul.mubr.f32.gmra.mxu0 %v838
        %v955 = vpop.f32.mrf.mxu0
        %v956 = vadd.f32 %v803, %v955
        %v957 = vpop.f32.mrf.mxu0
        %958 = vmatprep.mubr.f32.mxu0 0.0
        %959 = vmatmul.mubr.f32.gmra.mxu0 %v840
        %v960 = vpop.f32.mrf.mxu0
        %v961 = vadd.f32 %v808, %v960
        %v962 = vpop.f32.mrf.mxu0
        %963 = vmatprep.mubr.f32.mxu0 0.0
        %964 = vmatmul.mubr.f32.gmra.mxu0 %v842
        %v965 = vpop.f32.mrf.mxu0
        %v966 = vadd.f32 %v813, %v965
        %v967 = vpop.f32.mrf.mxu0
        %968 = vmatprep.mubr.f32.mxu0 0.0
        %969 = vmatmul.mubr.f32.gmra.mxu0 %v844
        %v970 = vpop.f32.mrf.mxu0
        %v971 = vadd.f32 %v818, %v970
        %v972 = vpop.f32.mrf.mxu0
        %973 = vdwg.mxu0
        %s974 = scalar_lea.vmem %s3, 4
        %v975 = vld [vmem:[%s974] sm:$0x3]
        %v976 = vsel %vm667, %v628, 0
        %v978 = vsel %vm667, %v630, 0
        %v980 = vsel %vm667, %v632, 0
        %v982 = vsel %vm667, %v634, 0
        %v984 = vsel %vm667, %v636, 0
        %v986 = vsel %vm667, %v638, 0
        %v988 = vsel %vm667, %v640, 0
        %v990 = vsel %vm667, %v642, 0
        %v992 = vsel %vm667, %v644, 0
        %v994 = vsel %vm667, %v646, 0
        %v996 = vsel %vm667, %v648, 0
        %v998 = vsel %vm667, %v650, 0
        %v1001 = vsel %vm692, %v975, 0
        %1003 = vmatprep.subr.mxu0 0.0
        %1004 = vmatpush1.msra.mxu0 0.0
        %1005 = vmatprep.subr.mxu0 0.0
        %1006 = vmatpush1.msra.mxu0 0.0
        %1007 = vmatprep.subr.mxu0 0.0
        %1008 = vmatpush1.msra.mxu0 0.0
        %1009 = vmatprep.subr.mxu0 0.0
        %1010 = vmatpush1.msra.mxu0 0.0
        %1011 = vmatprep.subr.mxu0 0.0
        %1012 = vmatpush1.msra.mxu0 0.0
        %1013 = vmatprep.subr.mxu0 0.0
        %1014 = vmatpush1.msra.mxu0 0.0
        %1015 = vmatprep.subr.mxu0 0.0
        %1016 = vmatpush1.msra.mxu0 0.0
        %1017 = vmatprep.subr.mxu0 0.0
        %1018 = vmatpush1.msra.mxu0 0.0
        %1019 = vmatprep.subr.mxu0 0.0
        %1020 = vmatpush1.msra.mxu0 0.0
        %1021 = vmatprep.subr.mxu0 0.0
        %1022 = vmatpush1.msra.mxu0 0.0
        %1023 = vmatprep.subr.mxu0 0.0
        %1024 = vmatpush1.msra.mxu0 0.0
        %1025 = vmatprep.subr.mxu0 0.0
        %1026 = vmatpush1.msra.mxu0 0.0
        %1027 = vmatprep.subr.mxu0 0.0
        %1028 = vmatpush1.msra.mxu0 0.0
        %1029 = vmatprep.subr.mxu0 0.0
        %1030 = vmatpush1.msra.mxu0 0.0
        %1031 = vmatprep.subr.mxu0 0.0
        %1032 = vmatpush1.msra.mxu0 0.0
        %1033 = vmatprep.subr.mxu0 0.0
        %1034 = vmatpush1.msra.mxu0 %v1001
        %1035 = vmatprep.subr.mxu0 0.0
        %1036 = vmatpush2.msra.mxu0 0.0
        %1037 = vmatprep.subr.mxu0 0.0
        %1038 = vmatpush2.msra.mxu0 0.0
        %1039 = vmatprep.subr.mxu0 0.0
        %1040 = vmatpush2.msra.mxu0 0.0
        %1041 = vmatprep.subr.mxu0 0.0
        %1042 = vmatpush2.msra.mxu0 0.0
        %1043 = vmatprep.subr.mxu0 0.0
        %1044 = vmatpush2.msra.mxu0 0.0
        %1045 = vmatprep.subr.mxu0 0.0
        %1046 = vmatpush2.msra.mxu0 0.0
        %1047 = vmatprep.subr.mxu0 0.0
        %1048 = vmatpush2.msra.mxu0 0.0
        %1049 = vmatprep.subr.mxu0 0.0
        %1050 = vmatpush2.msra.mxu0 0.0
        %1051 = vmatprep.subr.mxu0 0.0
        %1052 = vmatpush2.msra.mxu0 0.0
        %1053 = vmatprep.subr.mxu0 0.0
        %1054 = vmatpush2.msra.mxu0 0.0
        %1055 = vmatprep.subr.mxu0 0.0
        %1056 = vmatpush2.msra.mxu0 0.0
        %1057 = vmatprep.subr.mxu0 0.0
        %1058 = vmatpush2.msra.mxu0 0.0
        %1059 = vmatprep.subr.mxu0 0.0
        %1060 = vmatpush2.msra.mxu0 0.0
        %1061 = vmatprep.subr.mxu0 0.0
        %1062 = vmatpush2.msra.mxu0 0.0
        %1063 = vmatprep.subr.mxu0 0.0
        %1064 = vmatpush2.msra.mxu0 0.0
        %1065 = vmatprep.subr.mxu0 0.0
        %1066 = vmatpush2.msra.mxu0 0.0
        %1067 = vmatprep.mubr.f32.mxu0 0.0
        %1068 = vmatmul.mubr.f32.gmra.mxu0 %v976
        %v1069 = vpop.f32.mrf.mxu0
        %v1070 = vadd.f32 0.0, %v1069
        %v1071 = vpop.f32.mrf.mxu0
        %1072 = vmatprep.mubr.f32.mxu0 0.0
        %1073 = vmatmul.mubr.f32.gmra.mxu0 %v978
        %v1074 = vpop.f32.mrf.mxu0
        %v1075 = vadd.f32 0.0, %v1074
        %v1076 = vpop.f32.mrf.mxu0
        %1077 = vmatprep.mubr.f32.mxu0 0.0
        %1078 = vmatmul.mubr.f32.gmra.mxu0 %v980
        %v1079 = vpop.f32.mrf.mxu0
        %v1080 = vadd.f32 0.0, %v1079
        %v1081 = vpop.f32.mrf.mxu0
        %1082 = vmatprep.mubr.f32.mxu0 0.0
        %1083 = vmatmul.mubr.f32.gmra.mxu0 %v982
        %v1084 = vpop.f32.mrf.mxu0
        %v1085 = vadd.f32 0.0, %v1084
        %v1086 = vpop.f32.mrf.mxu0
        %1087 = vmatprep.mubr.f32.mxu0 0.0
        %1088 = vmatmul.mubr.f32.gmra.mxu0 %v984
        %v1089 = vpop.f32.mrf.mxu0
        %v1090 = vadd.f32 0.0, %v1089
        %v1091 = vpop.f32.mrf.mxu0
        %1092 = vmatprep.mubr.f32.mxu0 0.0
        %1093 = vmatmul.mubr.f32.gmra.mxu0 %v986
        %v1094 = vpop.f32.mrf.mxu0
        %v1095 = vadd.f32 0.0, %v1094
        %v1096 = vpop.f32.mrf.mxu0
        %1097 = vmatprep.mubr.f32.mxu0 0.0
        %1098 = vmatmul.mubr.f32.gmra.mxu0 %v988
        %v1099 = vpop.f32.mrf.mxu0
        %v1100 = vadd.f32 0.0, %v1099
        %v1101 = vpop.f32.mrf.mxu0
        %1102 = vmatprep.mubr.f32.mxu0 0.0
        %1103 = vmatmul.mubr.f32.gmra.mxu0 %v990
        %v1104 = vpop.f32.mrf.mxu0
        %v1105 = vadd.f32 0.0, %v1104
        %v1106 = vpop.f32.mrf.mxu0
        %1107 = vmatprep.mubr.f32.mxu0 0.0
        %1108 = vmatmul.mubr.f32.gmra.mxu0 %v992
        %v1109 = vpop.f32.mrf.mxu0
        %v1110 = vadd.f32 0.0, %v1109
        %v1111 = vpop.f32.mrf.mxu0
        %1112 = vmatprep.mubr.f32.mxu0 0.0
        %1113 = vmatmul.mubr.f32.gmra.mxu0 %v994
        %v1114 = vpop.f32.mrf.mxu0
        %v1115 = vadd.f32 0.0, %v1114
        %v1116 = vpop.f32.mrf.mxu0
        %1117 = vmatprep.mubr.f32.mxu0 0.0
        %1118 = vmatmul.mubr.f32.gmra.mxu0 %v996
        %v1119 = vpop.f32.mrf.mxu0
        %v1120 = vadd.f32 0.0, %v1119
        %v1121 = vpop.f32.mrf.mxu0
        %1122 = vmatprep.mubr.f32.mxu0 0.0
        %1123 = vmatmul.mubr.f32.gmra.mxu0 %v998
        %v1124 = vpop.f32.mrf.mxu0
        %v1125 = vadd.f32 0.0, %v1124
        %v1126 = vpop.f32.mrf.mxu0
        %1127 = vdwg.mxu0
        %v1128 = vadd.f32 %v916, %v1070
        %v1129 = vadd.f32 %v921, %v1075
        %v1130 = vadd.f32 %v926, %v1080
        %v1131 = vadd.f32 %v931, %v1085
        %v1132 = vadd.f32 %v936, %v1090
        %v1133 = vadd.f32 %v941, %v1095
        %v1134 = vadd.f32 %v946, %v1100
        %v1135 = vadd.f32 %v951, %v1105
        %v1136 = vadd.f32 %v956, %v1110
        %v1137 = vadd.f32 %v961, %v1115
        %v1138 = vadd.f32 %v966, %v1120
        %v1139 = vadd.f32 %v971, %v1125
        %s1140 = scalar_lea.vmem %s3, 6
        %v1141 = vld [vmem:[%s1140] sm:$0x3]
        %v1142 = vsel %vm667, %v613, 0
        %v1144 = vsel %vm667, %v615, 0
        %v1146 = vsel %vm667, %v617, 0
        %v1149 = vsel %vm692, %v1141, 0
        %1151 = vmatprep.subr.mxu0 0.0
        %1152 = vmatpush1.msra.mxu0 0.0
        %1153 = vmatprep.subr.mxu0 0.0
        %1154 = vmatpush1.msra.mxu0 0.0
        %1155 = vmatprep.subr.mxu0 0.0
        %1156 = vmatpush1.msra.mxu0 0.0
        %1157 = vmatprep.subr.mxu0 0.0
        %1158 = vmatpush1.msra.mxu0 0.0
        %1159 = vmatprep.subr.mxu0 0.0
        %1160 = vmatpush1.msra.mxu0 0.0
        %1161 = vmatprep.subr.mxu0 0.0
        %1162 = vmatpush1.msra.mxu0 0.0
        %1163 = vmatprep.subr.mxu0 0.0
        %1164 = vmatpush1.msra.mxu0 0.0
        %1165 = vmatprep.subr.mxu0 0.0
        %1166 = vmatpush1.msra.mxu0 0.0
        %1167 = vmatprep.subr.mxu0 0.0
        %1168 = vmatpush1.msra.mxu0 0.0
        %1169 = vmatprep.subr.mxu0 0.0
        %1170 = vmatpush1.msra.mxu0 0.0
        %1171 = vmatprep.subr.mxu0 0.0
        %1172 = vmatpush1.msra.mxu0 0.0
        %1173 = vmatprep.subr.mxu0 0.0
        %1174 = vmatpush1.msra.mxu0 0.0
        %1175 = vmatprep.subr.mxu0 0.0
        %1176 = vmatpush1.msra.mxu0 0.0
        %1177 = vmatprep.subr.mxu0 0.0
        %1178 = vmatpush1.msra.mxu0 0.0
        %1179 = vmatprep.subr.mxu0 0.0
        %1180 = vmatpush1.msra.mxu0 0.0
        %1181 = vmatprep.subr.mxu0 0.0
        %1182 = vmatpush1.msra.mxu0 %v1149
        %1183 = vmatprep.subr.mxu0 0.0
        %1184 = vmatpush2.msra.mxu0 0.0
        %1185 = vmatprep.subr.mxu0 0.0
        %1186 = vmatpush2.msra.mxu0 0.0
        %1187 = vmatprep.subr.mxu0 0.0
        %1188 = vmatpush2.msra.mxu0 0.0
        %1189 = vmatprep.subr.mxu0 0.0
        %1190 = vmatpush2.msra.mxu0 0.0
        %1191 = vmatprep.subr.mxu0 0.0
        %1192 = vmatpush2.msra.mxu0 0.0
        %1193 = vmatprep.subr.mxu0 0.0
        %1194 = vmatpush2.msra.mxu0 0.0
        %1195 = vmatprep.subr.mxu0 0.0
        %1196 = vmatpush2.msra.mxu0 0.0
        %1197 = vmatprep.subr.mxu0 0.0
        %1198 = vmatpush2.msra.mxu0 0.0
        %1199 = vmatprep.subr.mxu0 0.0
        %1200 = vmatpush2.msra.mxu0 0.0
        %1201 = vmatprep.subr.mxu0 0.0
        %1202 = vmatpush2.msra.mxu0 0.0
        %1203 = vmatprep.subr.mxu0 0.0
        %1204 = vmatpush2.msra.mxu0 0.0
        %1205 = vmatprep.subr.mxu0 0.0
        %1206 = vmatpush2.msra.mxu0 0.0
        %1207 = vmatprep.subr.mxu0 0.0
        %1208 = vmatpush2.msra.mxu0 0.0
        %1209 = vmatprep.subr.mxu0 0.0
        %1210 = vmatpush2.msra.mxu0 0.0
        %1211 = vmatprep.subr.mxu0 0.0
        %1212 = vmatpush2.msra.mxu0 0.0
        %1213 = vmatprep.subr.mxu0 0.0
        %1214 = vmatpush2.msra.mxu0 0.0
        %1215 = vmatprep.mubr.f32.mxu0 0.0
        %1216 = vmatmul.mubr.f32.gmra.mxu0 %v828
        %v1217 = vpop.f32.mrf.mxu0
        %v1218 = vadd.f32 0.0, %v1217
        %v1219 = vpop.f32.mrf.mxu0
        %1220 = vmatprep.mubr.f32.mxu0 0.0
        %1221 = vmatmul.mubr.f32.gmra.mxu0 %v830
        %v1222 = vpop.f32.mrf.mxu0
        %v1223 = vadd.f32 0.0, %v1222
        %v1224 = vpop.f32.mrf.mxu0
        %1225 = vmatprep.mubr.f32.mxu0 0.0
        %1226 = vmatmul.mubr.f32.gmra.mxu0 %v832
        %v1227 = vpop.f32.mrf.mxu0
        %v1228 = vadd.f32 0.0, %v1227
        %v1229 = vpop.f32.mrf.mxu0
        %1230 = vmatprep.mubr.f32.mxu0 0.0
        %1231 = vmatmul.mubr.f32.gmra.mxu0 %v834
        %v1232 = vpop.f32.mrf.mxu0
        %v1233 = vadd.f32 0.0, %v1232
        %v1234 = vpop.f32.mrf.mxu0
        %1235 = vmatprep.mubr.f32.mxu0 0.0
        %1236 = vmatmul.mubr.f32.gmra.mxu0 %v836
        %v1237 = vpop.f32.mrf.mxu0
        %v1238 = vadd.f32 0.0, %v1237
        %v1239 = vpop.f32.mrf.mxu0
        %1240 = vmatprep.mubr.f32.mxu0 0.0
        %1241 = vmatmul.mubr.f32.gmra.mxu0 %v838
        %v1242 = vpop.f32.mrf.mxu0
        %v1243 = vadd.f32 0.0, %v1242
        %v1244 = vpop.f32.mrf.mxu0
        %1245 = vmatprep.mubr.f32.mxu0 0.0
        %1246 = vmatmul.mubr.f32.gmra.mxu0 %v840
        %v1247 = vpop.f32.mrf.mxu0
        %v1248 = vadd.f32 0.0, %v1247
        %v1249 = vpop.f32.mrf.mxu0
        %1250 = vmatprep.mubr.f32.mxu0 0.0
        %1251 = vmatmul.mubr.f32.gmra.mxu0 %v842
        %v1252 = vpop.f32.mrf.mxu0
        %v1253 = vadd.f32 0.0, %v1252
        %v1254 = vpop.f32.mrf.mxu0
        %1255 = vmatprep.mubr.f32.mxu0 0.0
        %1256 = vmatmul.mubr.f32.gmra.mxu0 %v844
        %v1257 = vpop.f32.mrf.mxu0
        %v1258 = vadd.f32 0.0, %v1257
        %v1259 = vpop.f32.mrf.mxu0
        %1260 = vmatprep.mubr.f32.mxu0 0.0
        %1261 = vmatmul.mubr.f32.gmra.mxu0 %v1142
        %v1262 = vpop.f32.mrf.mxu0
        %v1263 = vadd.f32 0.0, %v1262
        %v1264 = vpop.f32.mrf.mxu0
        %1265 = vmatprep.mubr.f32.mxu0 0.0
        %1266 = vmatmul.mubr.f32.gmra.mxu0 %v1144
        %v1267 = vpop.f32.mrf.mxu0
        %v1268 = vadd.f32 0.0, %v1267
        %v1269 = vpop.f32.mrf.mxu0
        %1270 = vmatprep.mubr.f32.mxu0 0.0
        %1271 = vmatmul.mubr.f32.gmra.mxu0 %v1146
        %v1272 = vpop.f32.mrf.mxu0
        %v1273 = vadd.f32 0.0, %v1272
        %v1274 = vpop.f32.mrf.mxu0
        %1275 = vdwg.mxu0
        %v1276 = vadd.f32 %v1128, %v1218
        %v1277 = vadd.f32 %v1129, %v1223
        %v1278 = vadd.f32 %v1130, %v1228
        %v1279 = vadd.f32 %v1131, %v1233
        %v1280 = vadd.f32 %v1132, %v1238
        %v1281 = vadd.f32 %v1133, %v1243
        %v1282 = vadd.f32 %v1134, %v1248
        %v1283 = vadd.f32 %v1135, %v1253
        %v1284 = vadd.f32 %v1136, %v1258
        %v1285 = vadd.f32 %v1137, %v1263
        %v1286 = vadd.f32 %v1138, %v1268
        %v1287 = vadd.f32 %v1139, %v1273
        %s1288 = scalar_lea.vmem %s3, 8
        %v1289 = vld [vmem:[%s1288] sm:$0x3]
        %v1290 = vsel %vm667, %v546, 0
        %v1292 = vsel %vm667, %v547, 0
        %v1294 = vsel %vm667, %v548, 0
        %v1297 = vsel %vm692, %v1289, 0
        %1299 = vmatprep.subr.mxu0 0.0
        %1300 = vmatpush1.msra.mxu0 0.0
        %1301 = vmatprep.subr.mxu0 0.0
        %1302 = vmatpush1.msra.mxu0 0.0
        %1303 = vmatprep.subr.mxu0 0.0
        %1304 = vmatpush1.msra.mxu0 0.0
        %1305 = vmatprep.subr.mxu0 0.0
        %1306 = vmatpush1.msra.mxu0 0.0
        %1307 = vmatprep.subr.mxu0 0.0
        %1308 = vmatpush1.msra.mxu0 0.0
        %1309 = vmatprep.subr.mxu0 0.0
        %1310 = vmatpush1.msra.mxu0 0.0
        %1311 = vmatprep.subr.mxu0 0.0
        %1312 = vmatpush1.msra.mxu0 0.0
        %1313 = vmatprep.subr.mxu0 0.0
        %1314 = vmatpush1.msra.mxu0 0.0
        %1315 = vmatprep.subr.mxu0 0.0
        %1316 = vmatpush1.msra.mxu0 0.0
        %1317 = vmatprep.subr.mxu0 0.0
        %1318 = vmatpush1.msra.mxu0 0.0
        %1319 = vmatprep.subr.mxu0 0.0
        %1320 = vmatpush1.msra.mxu0 0.0
        %1321 = vmatprep.subr.mxu0 0.0
        %1322 = vmatpush1.msra.mxu0 0.0
        %1323 = vmatprep.subr.mxu0 0.0
        %1324 = vmatpush1.msra.mxu0 0.0
        %1325 = vmatprep.subr.mxu0 0.0
        %1326 = vmatpush1.msra.mxu0 0.0
        %1327 = vmatprep.subr.mxu0 0.0
        %1328 = vmatpush1.msra.mxu0 0.0
        %1329 = vmatprep.subr.mxu0 0.0
        %1330 = vmatpush1.msra.mxu0 %v1297
        %1331 = vmatprep.subr.mxu0 0.0
        %1332 = vmatpush2.msra.mxu0 0.0
        %1333 = vmatprep.subr.mxu0 0.0
        %1334 = vmatpush2.msra.mxu0 0.0
        %1335 = vmatprep.subr.mxu0 0.0
        %1336 = vmatpush2.msra.mxu0 0.0
        %1337 = vmatprep.subr.mxu0 0.0
        %1338 = vmatpush2.msra.mxu0 0.0
        %1339 = vmatprep.subr.mxu0 0.0
        %1340 = vmatpush2.msra.mxu0 0.0
        %1341 = vmatprep.subr.mxu0 0.0
        %1342 = vmatpush2.msra.mxu0 0.0
        %1343 = vmatprep.subr.mxu0 0.0
        %1344 = vmatpush2.msra.mxu0 0.0
        %1345 = vmatprep.subr.mxu0 0.0
        %1346 = vmatpush2.msra.mxu0 0.0
        %1347 = vmatprep.subr.mxu0 0.0
        %1348 = vmatpush2.msra.mxu0 0.0
        %1349 = vmatprep.subr.mxu0 0.0
        %1350 = vmatpush2.msra.mxu0 0.0
        %1351 = vmatprep.subr.mxu0 0.0
        %1352 = vmatpush2.msra.mxu0 0.0
        %1353 = vmatprep.subr.mxu0 0.0
        %1354 = vmatpush2.msra.mxu0 0.0
        %1355 = vmatprep.subr.mxu0 0.0
        %1356 = vmatpush2.msra.mxu0 0.0
        %1357 = vmatprep.subr.mxu0 0.0
        %1358 = vmatpush2.msra.mxu0 0.0
        %1359 = vmatprep.subr.mxu0 0.0
        %1360 = vmatpush2.msra.mxu0 0.0
        %1361 = vmatprep.subr.mxu0 0.0
        %1362 = vmatpush2.msra.mxu0 0.0
        %1363 = vmatprep.mubr.f32.mxu0 0.0
        %1364 = vmatmul.mubr.f32.gmra.mxu0 %v674
        %v1365 = vpop.f32.mrf.mxu0
        %v1366 = vadd.f32 0.0, %v1365
        %v1367 = vpop.f32.mrf.mxu0
        %1368 = vmatprep.mubr.f32.mxu0 0.0
        %1369 = vmatmul.mubr.f32.gmra.mxu0 %v676
        %v1370 = vpop.f32.mrf.mxu0
        %v1371 = vadd.f32 0.0, %v1370
        %v1372 = vpop.f32.mrf.mxu0
        %1373 = vmatprep.mubr.f32.mxu0 0.0
        %1374 = vmatmul.mubr.f32.gmra.mxu0 %v678
        %v1375 = vpop.f32.mrf.mxu0
        %v1376 = vadd.f32 0.0, %v1375
        %v1377 = vpop.f32.mrf.mxu0
        %1378 = vmatprep.mubr.f32.mxu0 0.0
        %1379 = vmatmul.mubr.f32.gmra.mxu0 %v680
        %v1380 = vpop.f32.mrf.mxu0
        %v1381 = vadd.f32 0.0, %v1380
        %v1382 = vpop.f32.mrf.mxu0
        %1383 = vmatprep.mubr.f32.mxu0 0.0
        %1384 = vmatmul.mubr.f32.gmra.mxu0 %v682
        %v1385 = vpop.f32.mrf.mxu0
        %v1386 = vadd.f32 0.0, %v1385
        %v1387 = vpop.f32.mrf.mxu0
        %1388 = vmatprep.mubr.f32.mxu0 0.0
        %1389 = vmatmul.mubr.f32.gmra.mxu0 %v684
        %v1390 = vpop.f32.mrf.mxu0
        %v1391 = vadd.f32 0.0, %v1390
        %v1392 = vpop.f32.mrf.mxu0
        %1393 = vmatprep.mubr.f32.mxu0 0.0
        %1394 = vmatmul.mubr.f32.gmra.mxu0 %v686
        %v1395 = vpop.f32.mrf.mxu0
        %v1396 = vadd.f32 0.0, %v1395
        %v1397 = vpop.f32.mrf.mxu0
        %1398 = vmatprep.mubr.f32.mxu0 0.0
        %1399 = vmatmul.mubr.f32.gmra.mxu0 %v688
        %v1400 = vpop.f32.mrf.mxu0
        %v1401 = vadd.f32 0.0, %v1400
        %v1402 = vpop.f32.mrf.mxu0
        %1403 = vmatprep.mubr.f32.mxu0 0.0
        %1404 = vmatmul.mubr.f32.gmra.mxu0 %v690
        %v1405 = vpop.f32.mrf.mxu0
        %v1406 = vadd.f32 0.0, %v1405
        %v1407 = vpop.f32.mrf.mxu0
        %1408 = vmatprep.mubr.f32.mxu0 0.0
        %1409 = vmatmul.mubr.f32.gmra.mxu0 %v1290
        %v1410 = vpop.f32.mrf.mxu0
        %v1411 = vadd.f32 0.0, %v1410
        %v1412 = vpop.f32.mrf.mxu0
        %1413 = vmatprep.mubr.f32.mxu0 0.0
        %1414 = vmatmul.mubr.f32.gmra.mxu0 %v1292
        %v1415 = vpop.f32.mrf.mxu0
        %v1416 = vadd.f32 0.0, %v1415
        %v1417 = vpop.f32.mrf.mxu0
        %1418 = vmatprep.mubr.f32.mxu0 0.0
        %1419 = vmatmul.mubr.f32.gmra.mxu0 %v1294
        %v1420 = vpop.f32.mrf.mxu0
        %v1421 = vadd.f32 0.0, %v1420
        %v1422 = vpop.f32.mrf.mxu0
        %1423 = vdwg.mxu0
        %v1424 = vadd.f32 %v1276, %v1366
        %v1425 = vadd.f32 %v1277, %v1371
        %v1426 = vadd.f32 %v1278, %v1376
        %v1427 = vadd.f32 %v1279, %v1381
        %v1428 = vadd.f32 %v1280, %v1386
        %v1429 = vadd.f32 %v1281, %v1391
        %v1430 = vadd.f32 %v1282, %v1396
        %v1431 = vadd.f32 %v1283, %v1401
        %v1432 = vadd.f32 %v1284, %v1406
        %v1433 = vadd.f32 %v1285, %v1411
        %v1434 = vadd.f32 %v1286, %v1416
        %v1435 = vadd.f32 %v1287, %v1421
        %s1436 = scalar_lea.vmem %s3, 10
        %v1437 = vld [vmem:[%s1436] sm:$0x3]
        %v1438 = vsel %vm667, %v652, 0
        %v1440 = vsel %vm667, %v654, 0
        %v1442 = vsel %vm667, %v656, 0
        %v1445 = vsel %vm692, %v1437, 0
        %1447 = vmatprep.subr.mxu0 0.0
        %1448 = vmatpush1.msra.mxu0 0.0
        %1449 = vmatprep.subr.mxu0 0.0
        %1450 = vmatpush1.msra.mxu0 0.0
        %1451 = vmatprep.subr.mxu0 0.0
        %1452 = vmatpush1.msra.mxu0 0.0
        %1453 = vmatprep.subr.mxu0 0.0
        %1454 = vmatpush1.msra.mxu0 0.0
        %1455 = vmatprep.subr.mxu0 0.0
        %1456 = vmatpush1.msra.mxu0 0.0
        %1457 = vmatprep.subr.mxu0 0.0
        %1458 = vmatpush1.msra.mxu0 0.0
        %1459 = vmatprep.subr.mxu0 0.0
        %1460 = vmatpush1.msra.mxu0 0.0
        %1461 = vmatprep.subr.mxu0 0.0
        %1462 = vmatpush1.msra.mxu0 0.0
        %1463 = vmatprep.subr.mxu0 0.0
        %1464 = vmatpush1.msra.mxu0 0.0
        %1465 = vmatprep.subr.mxu0 0.0
        %1466 = vmatpush1.msra.mxu0 0.0
        %1467 = vmatprep.subr.mxu0 0.0
        %1468 = vmatpush1.msra.mxu0 0.0
        %1469 = vmatprep.subr.mxu0 0.0
        %1470 = vmatpush1.msra.mxu0 0.0
        %1471 = vmatprep.subr.mxu0 0.0
        %1472 = vmatpush1.msra.mxu0 0.0
        %1473 = vmatprep.subr.mxu0 0.0
        %1474 = vmatpush1.msra.mxu0 0.0
        %1475 = vmatprep.subr.mxu0 0.0
        %1476 = vmatpush1.msra.mxu0 0.0
        %1477 = vmatprep.subr.mxu0 0.0
        %1478 = vmatpush1.msra.mxu0 %v1445
        %1479 = vmatprep.subr.mxu0 0.0
        %1480 = vmatpush2.msra.mxu0 0.0
        %1481 = vmatprep.subr.mxu0 0.0
        %1482 = vmatpush2.msra.mxu0 0.0
        %1483 = vmatprep.subr.mxu0 0.0
        %1484 = vmatpush2.msra.mxu0 0.0
        %1485 = vmatprep.subr.mxu0 0.0
        %1486 = vmatpush2.msra.mxu0 0.0
        %1487 = vmatprep.subr.mxu0 0.0
        %1488 = vmatpush2.msra.mxu0 0.0
        %1489 = vmatprep.subr.mxu0 0.0
        %1490 = vmatpush2.msra.mxu0 0.0
        %1491 = vmatprep.subr.mxu0 0.0
        %1492 = vmatpush2.msra.mxu0 0.0
        %1493 = vmatprep.subr.mxu0 0.0
        %1494 = vmatpush2.msra.mxu0 0.0
        %1495 = vmatprep.subr.mxu0 0.0
        %1496 = vmatpush2.msra.mxu0 0.0
        %1497 = vmatprep.subr.mxu0 0.0
        %1498 = vmatpush2.msra.mxu0 0.0
        %1499 = vmatprep.subr.mxu0 0.0
        %1500 = vmatpush2.msra.mxu0 0.0
        %1501 = vmatprep.subr.mxu0 0.0
        %1502 = vmatpush2.msra.mxu0 0.0
        %1503 = vmatprep.subr.mxu0 0.0
        %1504 = vmatpush2.msra.mxu0 0.0
        %1505 = vmatprep.subr.mxu0 0.0
        %1506 = vmatpush2.msra.mxu0 0.0
        %1507 = vmatprep.subr.mxu0 0.0
        %1508 = vmatpush2.msra.mxu0 0.0
        %1509 = vmatprep.subr.mxu0 0.0
        %1510 = vmatpush2.msra.mxu0 0.0
        %1511 = vmatprep.mubr.f32.mxu0 0.0
        %1512 = vmatmul.mubr.f32.gmra.mxu0 %v982
        %v1513 = vpop.f32.mrf.mxu0
        %v1514 = vadd.f32 0.0, %v1513
        %v1515 = vpop.f32.mrf.mxu0
        %1516 = vmatprep.mubr.f32.mxu0 0.0
        %1517 = vmatmul.mubr.f32.gmra.mxu0 %v984
        %v1518 = vpop.f32.mrf.mxu0
        %v1519 = vadd.f32 0.0, %v1518
        %v1520 = vpop.f32.mrf.mxu0
        %1521 = vmatprep.mubr.f32.mxu0 0.0
        %1522 = vmatmul.mubr.f32.gmra.mxu0 %v986
        %v1523 = vpop.f32.mrf.mxu0
        %v1524 = vadd.f32 0.0, %v1523
        %v1525 = vpop.f32.mrf.mxu0
        %1526 = vmatprep.mubr.f32.mxu0 0.0
        %1527 = vmatmul.mubr.f32.gmra.mxu0 %v988
        %v1528 = vpop.f32.mrf.mxu0
        %v1529 = vadd.f32 0.0, %v1528
        %v1530 = vpop.f32.mrf.mxu0
        %1531 = vmatprep.mubr.f32.mxu0 0.0
        %1532 = vmatmul.mubr.f32.gmra.mxu0 %v990
        %v1533 = vpop.f32.mrf.mxu0
        %v1534 = vadd.f32 0.0, %v1533
        %v1535 = vpop.f32.mrf.mxu0
        %1536 = vmatprep.mubr.f32.mxu0 0.0
        %1537 = vmatmul.mubr.f32.gmra.mxu0 %v992
        %v1538 = vpop.f32.mrf.mxu0
        %v1539 = vadd.f32 0.0, %v1538
        %v1540 = vpop.f32.mrf.mxu0
        %1541 = vmatprep.mubr.f32.mxu0 0.0
        %1542 = vmatmul.mubr.f32.gmra.mxu0 %v994
        %v1543 = vpop.f32.mrf.mxu0
        %v1544 = vadd.f32 0.0, %v1543
        %v1545 = vpop.f32.mrf.mxu0
        %1546 = vmatprep.mubr.f32.mxu0 0.0
        %1547 = vmatmul.mubr.f32.gmra.mxu0 %v996
        %v1548 = vpop.f32.mrf.mxu0
        %v1549 = vadd.f32 0.0, %v1548
        %v1550 = vpop.f32.mrf.mxu0
        %1551 = vmatprep.mubr.f32.mxu0 0.0
        %1552 = vmatmul.mubr.f32.gmra.mxu0 %v998
        %v1553 = vpop.f32.mrf.mxu0
        %v1554 = vadd.f32 0.0, %v1553
        %v1555 = vpop.f32.mrf.mxu0
        %1556 = vmatprep.mubr.f32.mxu0 0.0
        %1557 = vmatmul.mubr.f32.gmra.mxu0 %v1438
        %v1558 = vpop.f32.mrf.mxu0
        %v1559 = vadd.f32 0.0, %v1558
        %v1560 = vpop.f32.mrf.mxu0
        %1561 = vmatprep.mubr.f32.mxu0 0.0
        %1562 = vmatmul.mubr.f32.gmra.mxu0 %v1440
        %v1563 = vpop.f32.mrf.mxu0
        %v1564 = vadd.f32 0.0, %v1563
        %v1565 = vpop.f32.mrf.mxu0
        %1566 = vmatprep.mubr.f32.mxu0 0.0
        %1567 = vmatmul.mubr.f32.gmra.mxu0 %v1442
        %v1568 = vpop.f32.mrf.mxu0
        %v1569 = vadd.f32 0.0, %v1568
        %v1570 = vpop.f32.mrf.mxu0
        %1571 = vdwg.mxu0
        %v1572 = vadd.f32 %v1424, %v1514
        %v1573 = vadd.f32 %v1425, %v1519
        %v1574 = vadd.f32 %v1426, %v1524
        %v1575 = vadd.f32 %v1427, %v1529
        %v1576 = vadd.f32 %v1428, %v1534
        %v1577 = vadd.f32 %v1429, %v1539
        %v1578 = vadd.f32 %v1430, %v1544
        %v1579 = vadd.f32 %v1431, %v1549
        %v1580 = vadd.f32 %v1432, %v1554
        %v1581 = vadd.f32 %v1433, %v1559
        %v1582 = vadd.f32 %v1434, %v1564
        %v1583 = vadd.f32 %v1435, %v1569
        %s1584 = scalar_lea.vmem %s3, 12
        %v1585 = vld [vmem:[%s1584] sm:$0x3]
        %v1586 = vsel %vm667, %v619, 0
        %v1588 = vsel %vm667, %v621, 0
        %v1590 = vsel %vm667, %v622, 0
        %v1593 = vsel %vm692, %v1585, 0
        %1595 = vmatprep.subr.mxu0 0.0
        %1596 = vmatpush1.msra.mxu0 0.0
        %1597 = vmatprep.subr.mxu0 0.0
        %1598 = vmatpush1.msra.mxu0 0.0
        %1599 = vmatprep.subr.mxu0 0.0
        %1600 = vmatpush1.msra.mxu0 0.0
        %1601 = vmatprep.subr.mxu0 0.0
        %1602 = vmatpush1.msra.mxu0 0.0
        %1603 = vmatprep.subr.mxu0 0.0
        %1604 = vmatpush1.msra.mxu0 0.0
        %1605 = vmatprep.subr.mxu0 0.0
        %1606 = vmatpush1.msra.mxu0 0.0
        %1607 = vmatprep.subr.mxu0 0.0
        %1608 = vmatpush1.msra.mxu0 0.0
        %1609 = vmatprep.subr.mxu0 0.0
        %1610 = vmatpush1.msra.mxu0 0.0
        %1611 = vmatprep.subr.mxu0 0.0
        %1612 = vmatpush1.msra.mxu0 0.0
        %1613 = vmatprep.subr.mxu0 0.0
        %1614 = vmatpush1.msra.mxu0 0.0
        %1615 = vmatprep.subr.mxu0 0.0
        %1616 = vmatpush1.msra.mxu0 0.0
        %1617 = vmatprep.subr.mxu0 0.0
        %1618 = vmatpush1.msra.mxu0 0.0
        %1619 = vmatprep.subr.mxu0 0.0
        %1620 = vmatpush1.msra.mxu0 0.0
        %1621 = vmatprep.subr.mxu0 0.0
        %1622 = vmatpush1.msra.mxu0 0.0
        %1623 = vmatprep.subr.mxu0 0.0
        %1624 = vmatpush1.msra.mxu0 0.0
        %1625 = vmatprep.subr.mxu0 0.0
        %1626 = vmatpush1.msra.mxu0 %v1593
        %1627 = vmatprep.subr.mxu0 0.0
        %1628 = vmatpush2.msra.mxu0 0.0
        %1629 = vmatprep.subr.mxu0 0.0
        %1630 = vmatpush2.msra.mxu0 0.0
        %1631 = vmatprep.subr.mxu0 0.0
        %1632 = vmatpush2.msra.mxu0 0.0
        %1633 = vmatprep.subr.mxu0 0.0
        %1634 = vmatpush2.msra.mxu0 0.0
        %1635 = vmatprep.subr.mxu0 0.0
        %1636 = vmatpush2.msra.mxu0 0.0
        %1637 = vmatprep.subr.mxu0 0.0
        %1638 = vmatpush2.msra.mxu0 0.0
        %1639 = vmatprep.subr.mxu0 0.0
        %1640 = vmatpush2.msra.mxu0 0.0
        %1641 = vmatprep.subr.mxu0 0.0
        %1642 = vmatpush2.msra.mxu0 0.0
        %1643 = vmatprep.subr.mxu0 0.0
        %1644 = vmatpush2.msra.mxu0 0.0
        %1645 = vmatprep.subr.mxu0 0.0
        %1646 = vmatpush2.msra.mxu0 0.0
        %1647 = vmatprep.subr.mxu0 0.0
        %1648 = vmatpush2.msra.mxu0 0.0
        %1649 = vmatprep.subr.mxu0 0.0
        %1650 = vmatpush2.msra.mxu0 0.0
        %1651 = vmatprep.subr.mxu0 0.0
        %1652 = vmatpush2.msra.mxu0 0.0
        %1653 = vmatprep.subr.mxu0 0.0
        %1654 = vmatpush2.msra.mxu0 0.0
        %1655 = vmatprep.subr.mxu0 0.0
        %1656 = vmatpush2.msra.mxu0 0.0
        %1657 = vmatprep.subr.mxu0 0.0
        %1658 = vmatpush2.msra.mxu0 0.0
        %1659 = vmatprep.mubr.f32.mxu0 0.0
        %1660 = vmatmul.mubr.f32.gmra.mxu0 %v834
        %v1661 = vpop.f32.mrf.mxu0
        %v1662 = vadd.f32 0.0, %v1661
        %v1663 = vpop.f32.mrf.mxu0
        %1664 = vmatprep.mubr.f32.mxu0 0.0
        %1665 = vmatmul.mubr.f32.gmra.mxu0 %v836
        %v1666 = vpop.f32.mrf.mxu0
        %v1667 = vadd.f32 0.0, %v1666
        %v1668 = vpop.f32.mrf.mxu0
        %1669 = vmatprep.mubr.f32.mxu0 0.0
        %1670 = vmatmul.mubr.f32.gmra.mxu0 %v838
        %v1671 = vpop.f32.mrf.mxu0
        %v1672 = vadd.f32 0.0, %v1671
        %v1673 = vpop.f32.mrf.mxu0
        %1674 = vmatprep.mubr.f32.mxu0 0.0
        %1675 = vmatmul.mubr.f32.gmra.mxu0 %v840
        %v1676 = vpop.f32.mrf.mxu0
        %v1677 = vadd.f32 0.0, %v1676
        %v1678 = vpop.f32.mrf.mxu0
        %1679 = vmatprep.mubr.f32.mxu0 0.0
        %1680 = vmatmul.mubr.f32.gmra.mxu0 %v842
        %v1681 = vpop.f32.mrf.mxu0
        %v1682 = vadd.f32 0.0, %v1681
        %v1683 = vpop.f32.mrf.mxu0
        %1684 = vmatprep.mubr.f32.mxu0 0.0
        %1685 = vmatmul.mubr.f32.gmra.mxu0 %v844
        %v1686 = vpop.f32.mrf.mxu0
        %v1687 = vadd.f32 0.0, %v1686
        %v1688 = vpop.f32.mrf.mxu0
        %1689 = vmatprep.mubr.f32.mxu0 0.0
        %1690 = vmatmul.mubr.f32.gmra.mxu0 %v1142
        %v1691 = vpop.f32.mrf.mxu0
        %v1692 = vadd.f32 0.0, %v1691
        %v1693 = vpop.f32.mrf.mxu0
        %1694 = vmatprep.mubr.f32.mxu0 0.0
        %1695 = vmatmul.mubr.f32.gmra.mxu0 %v1144
        %v1696 = vpop.f32.mrf.mxu0
        %v1697 = vadd.f32 0.0, %v1696
        %v1698 = vpop.f32.mrf.mxu0
        %1699 = vmatprep.mubr.f32.mxu0 0.0
        %1700 = vmatmul.mubr.f32.gmra.mxu0 %v1146
        %v1701 = vpop.f32.mrf.mxu0
        %v1702 = vadd.f32 0.0, %v1701
        %v1703 = vpop.f32.mrf.mxu0
        %1704 = vmatprep.mubr.f32.mxu0 0.0
        %1705 = vmatmul.mubr.f32.gmra.mxu0 %v1586
        %v1706 = vpop.f32.mrf.mxu0
        %v1707 = vadd.f32 0.0, %v1706
        %v1708 = vpop.f32.mrf.mxu0
        %1709 = vmatprep.mubr.f32.mxu0 0.0
        %1710 = vmatmul.mubr.f32.gmra.mxu0 %v1588
        %v1711 = vpop.f32.mrf.mxu0
        %v1712 = vadd.f32 0.0, %v1711
        %v1713 = vpop.f32.mrf.mxu0
        %1714 = vmatprep.mubr.f32.mxu0 0.0
        %1715 = vmatmul.mubr.f32.gmra.mxu0 %v1590
        %v1716 = vpop.f32.mrf.mxu0
        %v1717 = vadd.f32 0.0, %v1716
        %v1718 = vpop.f32.mrf.mxu0
        %1719 = vdwg.mxu0
        %v1720 = vadd.f32 %v1572, %v1662
        %v1721 = vadd.f32 %v1573, %v1667
        %v1722 = vadd.f32 %v1574, %v1672
        %v1723 = vadd.f32 %v1575, %v1677
        %v1724 = vadd.f32 %v1576, %v1682
        %v1725 = vadd.f32 %v1577, %v1687
        %v1726 = vadd.f32 %v1578, %v1692
        %v1727 = vadd.f32 %v1579, %v1697
        %v1728 = vadd.f32 %v1580, %v1702
        %v1729 = vadd.f32 %v1581, %v1707
        %v1730 = vadd.f32 %v1582, %v1712
        %v1731 = vadd.f32 %v1583, %v1717
        %s1732 = scalar_lea.vmem %s3, 14
        %v1733 = vld [vmem:[%s1732] sm:$0x3]
        %v1734 = vsel %vm667, %v565, 0
        %v1736 = vsel %vm667, %v566, 0
        %v1738 = vsel %vm667, %v567, 0
        %v1741 = vsel %vm692, %v1733, 0
        %1743 = vmatprep.subr.mxu0 0.0
        %1744 = vmatpush1.msra.mxu0 0.0
        %1745 = vmatprep.subr.mxu0 0.0
        %1746 = vmatpush1.msra.mxu0 0.0
        %1747 = vmatprep.subr.mxu0 0.0
        %1748 = vmatpush1.msra.mxu0 0.0
        %1749 = vmatprep.subr.mxu0 0.0
        %1750 = vmatpush1.msra.mxu0 0.0
        %1751 = vmatprep.subr.mxu0 0.0
        %1752 = vmatpush1.msra.mxu0 0.0
        %1753 = vmatprep.subr.mxu0 0.0
        %1754 = vmatpush1.msra.mxu0 0.0
        %1755 = vmatprep.subr.mxu0 0.0
        %1756 = vmatpush1.msra.mxu0 0.0
        %1757 = vmatprep.subr.mxu0 0.0
        %1758 = vmatpush1.msra.mxu0 0.0
        %1759 = vmatprep.subr.mxu0 0.0
        %1760 = vmatpush1.msra.mxu0 0.0
        %1761 = vmatprep.subr.mxu0 0.0
        %1762 = vmatpush1.msra.mxu0 0.0
        %1763 = vmatprep.subr.mxu0 0.0
        %1764 = vmatpush1.msra.mxu0 0.0
        %1765 = vmatprep.subr.mxu0 0.0
        %1766 = vmatpush1.msra.mxu0 0.0
        %1767 = vmatprep.subr.mxu0 0.0
        %1768 = vmatpush1.msra.mxu0 0.0
        %1769 = vmatprep.subr.mxu0 0.0
        %1770 = vmatpush1.msra.mxu0 0.0
        %1771 = vmatprep.subr.mxu0 0.0
        %1772 = vmatpush1.msra.mxu0 0.0
        %1773 = vmatprep.subr.mxu0 0.0
        %1774 = vmatpush1.msra.mxu0 %v1741
        %1775 = vmatprep.subr.mxu0 0.0
        %1776 = vmatpush2.msra.mxu0 0.0
        %1777 = vmatprep.subr.mxu0 0.0
        %1778 = vmatpush2.msra.mxu0 0.0
        %1779 = vmatprep.subr.mxu0 0.0
        %1780 = vmatpush2.msra.mxu0 0.0
        %1781 = vmatprep.subr.mxu0 0.0
        %1782 = vmatpush2.msra.mxu0 0.0
        %1783 = vmatprep.subr.mxu0 0.0
        %1784 = vmatpush2.msra.mxu0 0.0
        %1785 = vmatprep.subr.mxu0 0.0
        %1786 = vmatpush2.msra.mxu0 0.0
        %1787 = vmatprep.subr.mxu0 0.0
        %1788 = vmatpush2.msra.mxu0 0.0
        %1789 = vmatprep.subr.mxu0 0.0
        %1790 = vmatpush2.msra.mxu0 0.0
        %1791 = vmatprep.subr.mxu0 0.0
        %1792 = vmatpush2.msra.mxu0 0.0
        %1793 = vmatprep.subr.mxu0 0.0
        %1794 = vmatpush2.msra.mxu0 0.0
        %1795 = vmatprep.subr.mxu0 0.0
        %1796 = vmatpush2.msra.mxu0 0.0
        %1797 = vmatprep.subr.mxu0 0.0
        %1798 = vmatpush2.msra.mxu0 0.0
        %1799 = vmatprep.subr.mxu0 0.0
        %1800 = vmatpush2.msra.mxu0 0.0
        %1801 = vmatprep.subr.mxu0 0.0
        %1802 = vmatpush2.msra.mxu0 0.0
        %1803 = vmatprep.subr.mxu0 0.0
        %1804 = vmatpush2.msra.mxu0 0.0
        %1805 = vmatprep.subr.mxu0 0.0
        %1806 = vmatpush2.msra.mxu0 0.0
        %1807 = vmatprep.mubr.f32.mxu0 0.0
        %1808 = vmatmul.mubr.f32.gmra.mxu0 %v680
        %v1809 = vpop.f32.mrf.mxu0
        %v1810 = vadd.f32 0.0, %v1809
        %v1811 = vpop.f32.mrf.mxu0
        %1812 = vmatprep.mubr.f32.mxu0 0.0
        %1813 = vmatmul.mubr.f32.gmra.mxu0 %v682
        %v1814 = vpop.f32.mrf.mxu0
        %v1815 = vadd.f32 0.0, %v1814
        %v1816 = vpop.f32.mrf.mxu0
        %1817 = vmatprep.mubr.f32.mxu0 0.0
        %1818 = vmatmul.mubr.f32.gmra.mxu0 %v684
        %v1819 = vpop.f32.mrf.mxu0
        %v1820 = vadd.f32 0.0, %v1819
        %v1821 = vpop.f32.mrf.mxu0
        %1822 = vmatprep.mubr.f32.mxu0 0.0
        %1823 = vmatmul.mubr.f32.gmra.mxu0 %v686
        %v1824 = vpop.f32.mrf.mxu0
        %v1825 = vadd.f32 0.0, %v1824
        %v1826 = vpop.f32.mrf.mxu0
        %1827 = vmatprep.mubr.f32.mxu0 0.0
        %1828 = vmatmul.mubr.f32.gmra.mxu0 %v688
        %v1829 = vpop.f32.mrf.mxu0
        %v1830 = vadd.f32 0.0, %v1829
        %v1831 = vpop.f32.mrf.mxu0
        %1832 = vmatprep.mubr.f32.mxu0 0.0
        %1833 = vmatmul.mubr.f32.gmra.mxu0 %v690
        %v1834 = vpop.f32.mrf.mxu0
        %v1835 = vadd.f32 0.0, %v1834
        %v1836 = vpop.f32.mrf.mxu0
        %1837 = vmatprep.mubr.f32.mxu0 0.0
        %1838 = vmatmul.mubr.f32.gmra.mxu0 %v1290
        %v1839 = vpop.f32.mrf.mxu0
        %v1840 = vadd.f32 0.0, %v1839
        %v1841 = vpop.f32.mrf.mxu0
        %1842 = vmatprep.mubr.f32.mxu0 0.0
        %1843 = vmatmul.mubr.f32.gmra.mxu0 %v1292
        %v1844 = vpop.f32.mrf.mxu0
        %v1845 = vadd.f32 0.0, %v1844
        %v1846 = vpop.f32.mrf.mxu0
        %1847 = vmatprep.mubr.f32.mxu0 0.0
        %1848 = vmatmul.mubr.f32.gmra.mxu0 %v1294
        %v1849 = vpop.f32.mrf.mxu0
        %v1850 = vadd.f32 0.0, %v1849
        %v1851 = vpop.f32.mrf.mxu0
        %1852 = vmatprep.mubr.f32.mxu0 0.0
        %1853 = vmatmul.mubr.f32.gmra.mxu0 %v1734
        %v1854 = vpop.f32.mrf.mxu0
        %v1855 = vadd.f32 0.0, %v1854
        %v1856 = vpop.f32.mrf.mxu0
        %1857 = vmatprep.mubr.f32.mxu0 0.0
        %1858 = vmatmul.mubr.f32.gmra.mxu0 %v1736
        %v1859 = vpop.f32.mrf.mxu0
        %v1860 = vadd.f32 0.0, %v1859
        %v1861 = vpop.f32.mrf.mxu0
        %1862 = vmatprep.mubr.f32.mxu0 0.0
        %1863 = vmatmul.mubr.f32.gmra.mxu0 %v1738
        %v1864 = vpop.f32.mrf.mxu0
        %v1865 = vadd.f32 0.0, %v1864
        %v1866 = vpop.f32.mrf.mxu0
        %1867 = vdwg.mxu0
        %v1868 = vadd.f32 %v1720, %v1810
        %v1869 = vadd.f32 %v1721, %v1815
        %v1870 = vadd.f32 %v1722, %v1820
        %v1871 = vadd.f32 %v1723, %v1825
        %v1872 = vadd.f32 %v1724, %v1830
        %v1873 = vadd.f32 %v1725, %v1835
        %v1874 = vadd.f32 %v1726, %v1840
        %v1875 = vadd.f32 %v1727, %v1845
        %v1876 = vadd.f32 %v1728, %v1850
        %v1877 = vadd.f32 %v1729, %v1855
        %v1878 = vadd.f32 %v1730, %v1860
        %v1879 = vadd.f32 %v1731, %v1865
        %s1880 = scalar_lea.vmem %s3, 16
        %v1881 = vld [vmem:[%s1880] sm:$0x3]
        %v1882 = vsel %vm667, %v658, 0
        %v1884 = vsel %vm667, %v660, 0
        %v1887 = vsel %vm667, %v663, 0
        %v1890 = vsel %vm692, %v1881, 0
        %1892 = vmatprep.subr.mxu0 0.0
        %1893 = vmatpush1.msra.mxu0 0.0
        %1894 = vmatprep.subr.mxu0 0.0
        %1895 = vmatpush1.msra.mxu0 0.0
        %1896 = vmatprep.subr.mxu0 0.0
        %1897 = vmatpush1.msra.mxu0 0.0
        %1898 = vmatprep.subr.mxu0 0.0
        %1899 = vmatpush1.msra.mxu0 0.0
        %1900 = vmatprep.subr.mxu0 0.0
        %1901 = vmatpush1.msra.mxu0 0.0
        %1902 = vmatprep.subr.mxu0 0.0
        %1903 = vmatpush1.msra.mxu0 0.0
        %1904 = vmatprep.subr.mxu0 0.0
        %1905 = vmatpush1.msra.mxu0 0.0
        %1906 = vmatprep.subr.mxu0 0.0
        %1907 = vmatpush1.msra.mxu0 0.0
        %1908 = vmatprep.subr.mxu0 0.0
        %1909 = vmatpush1.msra.mxu0 0.0
        %1910 = vmatprep.subr.mxu0 0.0
        %1911 = vmatpush1.msra.mxu0 0.0
        %1912 = vmatprep.subr.mxu0 0.0
        %1913 = vmatpush1.msra.mxu0 0.0
        %1914 = vmatprep.subr.mxu0 0.0
        %1915 = vmatpush1.msra.mxu0 0.0
        %1916 = vmatprep.subr.mxu0 0.0
        %1917 = vmatpush1.msra.mxu0 0.0
        %1918 = vmatprep.subr.mxu0 0.0
        %1919 = vmatpush1.msra.mxu0 0.0
        %1920 = vmatprep.subr.mxu0 0.0
        %1921 = vmatpush1.msra.mxu0 0.0
        %1922 = vmatprep.subr.mxu0 0.0
        %1923 = vmatpush1.msra.mxu0 %v1890
        %1924 = vmatprep.subr.mxu0 0.0
        %1925 = vmatpush2.msra.mxu0 0.0
        %1926 = vmatprep.subr.mxu0 0.0
        %1927 = vmatpush2.msra.mxu0 0.0
        %1928 = vmatprep.subr.mxu0 0.0
        %1929 = vmatpush2.msra.mxu0 0.0
        %1930 = vmatprep.subr.mxu0 0.0
        %1931 = vmatpush2.msra.mxu0 0.0
        %1932 = vmatprep.subr.mxu0 0.0
        %1933 = vmatpush2.msra.mxu0 0.0
        %1934 = vmatprep.subr.mxu0 0.0
        %1935 = vmatpush2.msra.mxu0 0.0
        %1936 = vmatprep.subr.mxu0 0.0
        %1937 = vmatpush2.msra.mxu0 0.0
        %1938 = vmatprep.subr.mxu0 0.0
        %1939 = vmatpush2.msra.mxu0 0.0
        %1940 = vmatprep.subr.mxu0 0.0
        %1941 = vmatpush2.msra.mxu0 0.0
        %1942 = vmatprep.subr.mxu0 0.0
        %1943 = vmatpush2.msra.mxu0 0.0
        %1944 = vmatprep.subr.mxu0 0.0
        %1945 = vmatpush2.msra.mxu0 0.0
        %1946 = vmatprep.subr.mxu0 0.0
        %1947 = vmatpush2.msra.mxu0 0.0
        %1948 = vmatprep.subr.mxu0 0.0
        %1949 = vmatpush2.msra.mxu0 0.0
        %1950 = vmatprep.subr.mxu0 0.0
        %1951 = vmatpush2.msra.mxu0 0.0
        %1952 = vmatprep.subr.mxu0 0.0
        %1953 = vmatpush2.msra.mxu0 0.0
        %1954 = vmatprep.subr.mxu0 0.0
        %1955 = vmatpush2.msra.mxu0 0.0
        %1956 = vmatprep.mubr.f32.mxu0 0.0
        %1957 = vmatmul.mubr.f32.gmra.mxu0 %v988
        %v1958 = vpop.f32.mrf.mxu0
        %v1959 = vadd.f32 0.0, %v1958
        %v1960 = vpop.f32.mrf.mxu0
        %1961 = vmatprep.mubr.f32.mxu0 0.0
        %1962 = vmatmul.mubr.f32.gmra.mxu0 %v990
        %v1963 = vpop.f32.mrf.mxu0
        %v1964 = vadd.f32 0.0, %v1963
        %v1965 = vpop.f32.mrf.mxu0
        %1966 = vmatprep.mubr.f32.mxu0 0.0
        %1967 = vmatmul.mubr.f32.gmra.mxu0 %v992
        %v1968 = vpop.f32.mrf.mxu0
        %v1969 = vadd.f32 0.0, %v1968
        %v1970 = vpop.f32.mrf.mxu0
        %1971 = vmatprep.mubr.f32.mxu0 0.0
        %1972 = vmatmul.mubr.f32.gmra.mxu0 %v994
        %v1973 = vpop.f32.mrf.mxu0
        %v1974 = vadd.f32 0.0, %v1973
        %v1975 = vpop.f32.mrf.mxu0
        %1976 = vmatprep.mubr.f32.mxu0 0.0
        %1977 = vmatmul.mubr.f32.gmra.mxu0 %v996
        %v1978 = vpop.f32.mrf.mxu0
        %v1979 = vadd.f32 0.0, %v1978
        %v1980 = vpop.f32.mrf.mxu0
        %1981 = vmatprep.mubr.f32.mxu0 0.0
        %1982 = vmatmul.mubr.f32.gmra.mxu0 %v998
        %v1983 = vpop.f32.mrf.mxu0
        %v1984 = vadd.f32 0.0, %v1983
        %v1985 = vpop.f32.mrf.mxu0
        %1986 = vmatprep.mubr.f32.mxu0 0.0
        %1987 = vmatmul.mubr.f32.gmra.mxu0 %v1438
        %v1988 = vpop.f32.mrf.mxu0
        %v1989 = vadd.f32 0.0, %v1988
        %v1990 = vpop.f32.mrf.mxu0
        %1991 = vmatprep.mubr.f32.mxu0 0.0
        %1992 = vmatmul.mubr.f32.gmra.mxu0 %v1440
        %v1993 = vpop.f32.mrf.mxu0
        %v1994 = vadd.f32 0.0, %v1993
        %v1995 = vpop.f32.mrf.mxu0
        %1996 = vmatprep.mubr.f32.mxu0 0.0
        %1997 = vmatmul.mubr.f32.gmra.mxu0 %v1442
        %v1998 = vpop.f32.mrf.mxu0
        %v1999 = vadd.f32 0.0, %v1998
        %v2000 = vpop.f32.mrf.mxu0
        %2001 = vmatprep.mubr.f32.mxu0 0.0
        %2002 = vmatmul.mubr.f32.gmra.mxu0 %v1882
        %v2003 = vpop.f32.mrf.mxu0
        %v2004 = vadd.f32 0.0, %v2003
        %v2005 = vpop.f32.mrf.mxu0
        %2006 = vmatprep.mubr.f32.mxu0 0.0
        %2007 = vmatmul.mubr.f32.gmra.mxu0 %v1884
        %v2008 = vpop.f32.mrf.mxu0
        %v2009 = vadd.f32 0.0, %v2008
        %v2010 = vpop.f32.mrf.mxu0
        %2011 = vmatprep.mubr.f32.mxu0 0.0
        %2012 = vmatmul.mubr.f32.gmra.mxu0 %v1887
        %v2013 = vpop.f32.mrf.mxu0
        %v2014 = vadd.f32 0.0, %v2013
        %v2015 = vpop.f32.mrf.mxu0
        %2016 = vdwg.mxu0
        %v2017 = vadd.f32 %v1868, %v1959
        %v2018 = vadd.f32 %v1869, %v1964
        %v2019 = vadd.f32 %v1870, %v1969
        %v2020 = vadd.f32 %v1871, %v1974
        %v2021 = vadd.f32 %v1872, %v1979
        %v2022 = vadd.f32 %v1873, %v1984
        %v2023 = vadd.f32 %v1874, %v1989
        %v2024 = vadd.f32 %v1875, %v1994
        %v2025 = vadd.f32 %v1876, %v1999
        %v2026 = vadd.f32 %v1877, %v2004
        %v2027 = vadd.f32 %v1878, %v2009
        %v2028 = vadd.f32 %v1879, %v2014
        %v2029 = vld [vmem:[%s4] sm:$0x1]
        %v2031 = vlaneseq
        %v2032 = vshrl.u32 %v2031, 7
        %v2033 = vsub.s32 0, %v2032
        %v2034 = vrot.slane %v2029, %v2033
        %v2036 = vadd.f32 %v2017, %v2034
        %v2037 = vadd.f32 %v2018, %v2034
        %v2038 = vadd.f32 %v2019, %v2034
        %v2039 = vadd.f32 %v2020, %v2034
        %v2040 = vadd.f32 %v2021, %v2034
        %v2041 = vadd.f32 %v2022, %v2034
        %v2042 = vadd.f32 %v2023, %v2034
        %v2043 = vadd.f32 %v2024, %v2034
        %v2044 = vadd.f32 %v2025, %v2034
        %v2045 = vadd.f32 %v2026, %v2034
        %v2046 = vadd.f32 %v2027, %v2034
        %v2047 = vadd.f32 %v2028, %v2034
        %v2048 = vsel %vm534, %v2036, 0.0
        %v2049 = vsel %vm535, %v2037, 0.0
        %v2050 = vsel %vm536, %v2038, 0.0
        %v2051 = vsel %vm534, %v2039, 0.0
        %v2052 = vsel %vm535, %v2040, 0.0
        %v2053 = vsel %vm536, %v2041, 0.0
        %v2054 = vsel %vm534, %v2042, 0.0
        %v2055 = vsel %vm535, %v2043, 0.0
        %v2056 = vsel %vm536, %v2044, 0.0
        %v2057 = vsel %vm534, %v2045, 0.0
        %v2058 = vsel %vm535, %v2046, 0.0
        %v2059 = vsel %vm536, %v2047, 0.0
        %v2060 = vadd.f32 %v2048, %v2049
        %v2061 = vadd.f32 %v2060, %v2050
        %v2062 = vadd.f32 %v2061, %v2051
        %v2063 = vadd.f32 %v2062, %v2052
        %v2064 = vadd.f32 %v2063, %v2053
        %v2065 = vadd.f32 %v2064, %v2054
        %v2066 = vadd.f32 %v2065, %v2055
        %v2067 = vadd.f32 %v2066, %v2056
        %v2068 = vadd.f32 %v2067, %v2057
        %v2069 = vadd.f32 %v2068, %v2058
        %v2070 = vadd.f32 %v2069, %v2059
        %v2071 = vrot.slane %v2070, 4
        %v2072 = vadd.f32 %v2070, %v2071
        %v2073 = vrot.slane %v2072, 2
        %v2074 = vadd.f32 %v2072, %v2073
        %v2075 = vrot.slane %v2074, 1
        %v2076 = vadd.f32 %v2074, %v2075
        %v2077 = vmul.f32 %v2048, %v2036
        %v2078 = vmul.f32 %v2049, %v2037
        %v2079 = vmul.f32 %v2050, %v2038
        %v2080 = vmul.f32 %v2051, %v2039
        %v2081 = vmul.f32 %v2052, %v2040
        %v2082 = vmul.f32 %v2053, %v2041
        %v2083 = vmul.f32 %v2054, %v2042
        %v2084 = vmul.f32 %v2055, %v2043
        %v2085 = vmul.f32 %v2056, %v2044
        %v2086 = vmul.f32 %v2057, %v2045
        %v2087 = vmul.f32 %v2058, %v2046
        %v2088 = vmul.f32 %v2059, %v2047
        %v2089 = vadd.f32 %v2077, %v2078
        %v2090 = vadd.f32 %v2089, %v2079
        %v2091 = vadd.f32 %v2090, %v2080
        %v2092 = vadd.f32 %v2091, %v2081
        %v2093 = vadd.f32 %v2092, %v2082
        %v2094 = vadd.f32 %v2093, %v2083
        %v2095 = vadd.f32 %v2094, %v2084
        %v2096 = vadd.f32 %v2095, %v2085
        %v2097 = vadd.f32 %v2096, %v2086
        %v2098 = vadd.f32 %v2097, %v2087
        %v2099 = vadd.f32 %v2098, %v2088
        %v2100 = vrot.slane %v2099, 4
        %v2101 = vadd.f32 %v2099, %v2100
        %v2102 = vrot.slane %v2101, 2
        %v2103 = vadd.f32 %v2101, %v2102
        %v2104 = vrot.slane %v2103, 1
        %v2105 = vadd.f32 %v2103, %v2104
        %v2106 = vsel %vm588, %v2076, %v2105
        %vm2107 = vcmask 123904
        %2108 = vst.msk [vmem:[%s430] sm:$0x3] %vm2107, %v2106
        %vm2109 = vcmask 130048
        %2110 = vst.msk [vmem:[%s485] sm:$0xff] %vm2109, %v2036
        %2111 = vst.msk [vmem:[%s485 + $0x8] sm:$0xff] %vm2109, %v2037
        %2112 = vst.msk [vmem:[%s485 + $0x10] sm:$0xff] %vm2109, %v2038
        %2113 = vst.msk [vmem:[%s485 + $0x18] sm:$0xff] %vm2109, %v2039
        %2114 = vst.msk [vmem:[%s485 + $0x20] sm:$0xff] %vm2109, %v2040
        %2115 = vst.msk [vmem:[%s485 + $0x28] sm:$0xff] %vm2109, %v2041
        %2116 = vst.msk [vmem:[%s485 + $0x30] sm:$0xff] %vm2109, %v2042
        %2117 = vst.msk [vmem:[%s485 + $0x38] sm:$0xff] %vm2109, %v2043
        %2118 = vst.msk [vmem:[%s485 + $0x40] sm:$0xff] %vm2109, %v2044
        %2119 = vst.msk [vmem:[%s485 + $0x48] sm:$0xff] %vm2109, %v2045
        %2120 = vst.msk [vmem:[%s485 + $0x50] sm:$0xff] %vm2109, %v2046
        %2121 = vst.msk [vmem:[%s485 + $0x58] sm:$0xff] %vm2109, %v2047
        %s2122 = smul.u32 4, %s28
        %p2123 = scmp.lt.s32.totalorder %s27, 1
        %s2124 = scalar_select %p2123, %s27, 1
        %p2125 = scmp.lt.s32.totalorder %s2122, 15
        %s2126 = scalar_select %p2125, %s2122, 15
        %s2127 = smul.addr %s2126, 3
        %s2128 = smul.addr %s2124, 48
        %s2129 = sadd.s32 %s2127, %s2128
        %s2130 = smul.addr %s2129, 8
        %s2131 = scalar_lea.vmem %s7, %s2130
        %s2132 = sand.u32 %s257, 1
        %s2133 = scalar_lea.sflag [#allocation3], %s2132
        %s2134 = sand.u32 %s257, 1
        %s2135 = smul.addr %s2134, 2
        %s2136 = scalar_lea.vmem [#allocation2], %s2135
        // Predicated region
        $region49: #{tpu_custom_call.1} parent=47 // pred_check
          %p2137 = pneg %p239
        $region50: #{tpu_custom_call.1} parent=47 // pred_check_branch
          %2139 = sbr.rel (%p2137) target = $region52
        $region51: #{tpu_custom_call.1} parent=47 // pred_region
          %s2140 = smul.u32 4, %s28
        $region52: #{tpu_custom_call.1} parent=47 // pred_fallthru
          _
        // Predicated region
        $region53: #{tpu_custom_call.1} parent=47 // pred_check
          %p2141 = pneg %p267
        $region54: #{tpu_custom_call.1} parent=47 // pred_check_branch
          %2143 = sbr.rel (%p2141) target = $region56
        $region55: #{tpu_custom_call.1} parent=47 // pred_region
          %s2145 = ssub.s32 32, 32
          %2146 = vsyncadd %s2133, %s2145
          %s2147 = smul.addr %s27, 4
          %s2148 = sadd.s32 %s28, %s2147
          %s2149 = smul.addr %s2148, 32
          %s2150 = scalar_lea.hbm %s8, %s2149
          %s2152 = sshll.u32 %s2136, 4
          %s2153 = int_to_ptr.vmem [resolvable:$true] %s2152
          %2155 = dma.vmem_to_hbm [thread:$0]  %s2153, 32, %s2150, %s2133
        $region56: #{tpu_custom_call.1} parent=47 // pred_fallthru
          _
      $region48: #{tpu_custom_call.1} parent=5 // pred_fallthru
        _
      %p2156 = scmp.le.s32.totalorder 2, %s18
      // Predicated region
      $region57: #{tpu_custom_call.1} parent=5 // pred_check
        %p2157 = pneg %p2156
      $region58: #{tpu_custom_call.1} parent=5 // pred_check_branch
        %2159 = sbr.rel (%p2157) target = $region60
      $region59: #{tpu_custom_call.1} parent=5 // pred_region
        %s2160 = ssub.s32 %s18, 2
        // Predicated region
        $region61: #{tpu_custom_call.1} parent=59 // pred_check
          %p2161 = pneg %p245
        $region62: #{tpu_custom_call.1} parent=59 // pred_check_branch
          %2163 = sbr.rel (%p2161) target = $region64
        $region63: #{tpu_custom_call.1} parent=59 // pred_region
          %s2164 = smul.u32 4, %s30
          %p2165 = scmp.lt.s32.totalorder %s29, 1
          %s2166 = scalar_select %p2165, %s29, 1
          %p2167 = scmp.lt.s32.totalorder %s2164, 15
          %s2168 = scalar_select %p2167, %s2164, 15
          %s2169 = smul.addr %s2168, 3
          %s2170 = smul.addr %s2166, 48
          %s2171 = sadd.s32 %s2169, %s2170
          %s2172 = smul.addr %s2171, 8
          %s2173 = scalar_lea.vmem %s7, %s2172
        $region64: #{tpu_custom_call.1} parent=59 // pred_fallthru
          _
        // Predicated region
        $region65: #{tpu_custom_call.1} parent=59 // pred_check
          %p2174 = pneg %p273
        $region66: #{tpu_custom_call.1} parent=59 // pred_check_branch
          %2176 = sbr.rel (%p2174) target = $region68
        $region67: #{tpu_custom_call.1} parent=59 // pred_region
          %s2177 = sand.u32 %s258, 1
          %s2178 = scalar_lea.sflag [#allocation3], %s2177
          %s2179 = sand.u32 %s258, 1
          %s2180 = smul.addr %s2179, 2
          %s2181 = scalar_lea.vmem [#allocation2], %s2180
          %2182 = dma.done %s2178, 32
        $region68: #{tpu_custom_call.1} parent=59 // pred_fallthru
          _
      $region60: #{tpu_custom_call.1} parent=5 // pred_fallthru
        _
    $region6: #{tpu_custom_call.1} parent=1 // loop_footer
      %s22 = sadd.s32 1, %s18
    $region7: #{tpu_custom_call.1} parent=1 // loop_footer_branch
      %17 = sbr.rel target = $region3
    $region8: #{tpu_custom_call.1} parent=1 // loop_exit
      _
    %2183 = vsyncpa [#allocation3], 1
    %s2184 = scalar_lea.sflag [#allocation3], 1
    %2185 = vsyncpa %s2184, 1

</llo_original>
